<compile_context>
chip_gen: v5e
topology: v5e:2x2
jax: 0.10.0
libtpu: 0.0.40
codegen_flags: <defaults>
</compile_context>

<pallas_src>
import jax
import jax.numpy as jnp
from jax import lax
from jax.experimental import pallas as pl
from jax.experimental.pallas import tpu as pltpu

# Small, TPU-friendly shapes consistent with the module's __init__.
SEQ = 16            # tokens / patches per sample
BATCH = 32          # samples folded into the row grid
MID = 256           # mid_dim
EMB = 128           # emb_dim
HID = 2 * MID       # FF hidden = mid_dim * 2
WD = 10             # w_dim
MODW = 2 * MID + 2 * EMB   # packed modulation width (gamma1|beta1|gamma2|beta2)
EPS = 1e-5          # nn.LayerNorm default eps


def _row_tile() -> int:
    """MXU M-tile: 128 fills v5e's 4x128x128 MXU; 256 matches v6e/v7x 256x256."""
    try:
        kind = jax.devices()[0].device_kind.lower()
    except Exception:
        return 128
    return 256 if ("v6" in kind or "v7" in kind) else 128


def cnnenc_fwd_kernel(
    x_ref,                      # (TM, MID)  f32   streamed per grid step
    mod_ref,                    # (1, MODW)  f32   resident (constant index_map)
    fc1w_ref, fc1b_ref,         # (MID, HID) bf16, (1, HID) f32   resident
    fc2w_ref, fc2b_ref,         # (HID, EMB) bf16, (1, EMB) f32   resident
    o_ref,                      # (TM, EMB)  f32
):
    x = x_ref[...]

    # Packed effective modulation (LayerNorm affine already folded in).
    g1 = mod_ref[:, 0:MID]
    b1 = mod_ref[:, MID:2 * MID]
    g2 = mod_ref[:, 2 * MID:2 * MID + EMB]
    b2 = mod_ref[:, 2 * MID + EMB:2 * MID + 2 * EMB]

    # ---- SLN1: LayerNorm (two-pass variance) + w-conditioned modulation ----
    mu1 = jnp.mean(x, axis=-1, keepdims=True)
    xc = x - mu1
    var1 = jnp.mean(xc * xc, axis=-1, keepdims=True)
    h = g1 * (xc * lax.rsqrt(var1 + EPS)) + b1            # (TM, MID) f32

    # ---- FF: Linear -> ReLU -> Linear (bf16 MXU operands, f32 accumulate) ----
    h1 = jnp.dot(h.astype(jnp.bfloat16), fc1w_ref[...],
                 preferred_element_type=jnp.float32) + fc1b_ref[...]
    h1 = jnp.maximum(h1, 0.0)                              # (TM, HID) f32
    h2 = jnp.dot(h1.astype(jnp.bfloat16), fc2w_ref[...],
                 preferred_element_type=jnp.float32) + fc2b_ref[...]

    # ---- SLN2 ----
    mu2 = jnp.mean(h2, axis=-1, keepdims=True)
    hc = h2 - mu2
    var2 = jnp.mean(hc * hc, axis=-1, keepdims=True)
    o_ref[...] = g2 * (hc * lax.rsqrt(var2 + EPS)) + b2    # (TM, EMB) f32


def prepare_params(raw):
    """One-time fold: stack the 4 modulation projections (+ inner LN affine)
    into a single (WD, MODW) matrix / bias, and cast FF weights to bf16 once."""
    p = raw
    mod_W = jnp.concatenate(
        [p["g1w"] * p["ln1g"],                       # -> eff gamma1
         p["g1w"] * p["ln1b"] + p["b1w"],            # -> eff beta1
         p["g2w"] * p["ln2g"],                       # -> eff gamma2
         p["g2w"] * p["ln2b"] + p["b2w"]],           # -> eff beta2
        axis=1)                                      # (WD, MODW)
    mod_b = jnp.concatenate(
        [p["g1b"] * p["ln1g"],
         p["g1b"] * p["ln1b"] + p["b1b"],
         p["g2b"] * p["ln2g"],
         p["g2b"] * p["ln2b"] + p["b2b"]],
        axis=1)                                      # (1, MODW)
    return dict(mod_W=mod_W, mod_b=mod_b,
                fc1w=p["fc1w"].astype(jnp.bfloat16), fc1b=p["fc1b"],
                fc2w=p["fc2w"].astype(jnp.bfloat16), fc2b=p["fc2b"])


def cnnenc_forward(x, w, params):
    """x: (..., MID) f32, w: (WD,) f32  ->  (..., EMB) f32."""
    assert x.shape[-1] == MID
    lead = x.shape[:-1]
    x2 = x.reshape(-1, MID)
    rows = x2.shape[0]

    tm = _row_tile()
    rows_p = pl.cdiv(rows, tm) * tm
    if rows_p != rows:
        x2 = jnp.pad(x2, ((0, rows_p - rows), (0, 0)))

    # All w-conditioned modulation in ONE small matmul (single XLA fusion).
    mod = w.reshape(1, WD) @ params["mod_W"] + params["mod_b"]   # (1, MODW) f32

    const = lambda i: (0, 0)   # weights: DMA once, stay resident across steps
    flops = 2 * rows_p * (MID * HID + HID * EMB)
    bytes_accessed = (rows_p * (MID + EMB) * 4            # activations in/out
                      + MID * HID * 2 + HID * EMB * 2     # bf16 FF weights
                      + (MODW + HID + EMB) * 4)           # mod vector + biases

    out = pl.pallas_call(
        cnnenc_fwd_kernel,
        out_shape=jax.ShapeDtypeStruct((rows_p, EMB), jnp.float32),
        grid=(rows_p // tm,),
        in_specs=[
            pl.BlockSpec((tm, MID), lambda i: (i, 0)),   # x: per-step row tile
            pl.BlockSpec((1, MODW), const),
            pl.BlockSpec((MID, HID), const),
            pl.BlockSpec((1, HID), const),
            pl.BlockSpec((HID, EMB), const),
            pl.BlockSpec((1, EMB), const),
        ],
        out_specs=pl.BlockSpec((tm, EMB), lambda i: (i, 0)),
        compiler_params=pltpu.CompilerParams(
            dimension_semantics=("parallel",)),          # megacore sharding on v7x
        cost_estimate=pl.CostEstimate(
            flops=flops, transcendentals=2 * rows_p,
            bytes_accessed=bytes_accessed),
    )(x2, mod, params["fc1w"], params["fc1b"], params["fc2w"], params["fc2b"])

    return out[:rows].reshape(*lead, EMB)


def init_raw_params(key):
    """Deterministic synthetic parameters (weights stored as (in, out), f32)."""
    ks = jax.random.split(key, 6)

    def lin(k, fan_in, fan_out):
        scale = 1.0 / jnp.sqrt(jnp.float32(fan_in))
        kw, kb = jax.random.split(k)
        W = jax.random.uniform(kw, (fan_in, fan_out), jnp.float32, -scale, scale)
        b = jax.random.uniform(kb, (1, fan_out), jnp.float32, -scale, scale)
        return W, b

    g1w, g1b = lin(ks[0], WD, MID)
    b1w, b1b = lin(ks[1], WD, MID)
    fc1w, fc1b = lin(ks[2], MID, HID)
    fc2w, fc2b = lin(ks[3], HID, EMB)
    g2w, g2b = lin(ks[4], WD, EMB)
    b2w, b2b = lin(ks[5], WD, EMB)
    return dict(
        g1w=g1w, g1b=g1b, b1w=b1w, b1b=b1b,
        ln1g=jnp.ones((1, MID), jnp.float32), ln1b=jnp.zeros((1, MID), jnp.float32),
        fc1w=fc1w, fc1b=fc1b, fc2w=fc2w, fc2b=fc2b,
        g2w=g2w, g2b=g2b, b2w=b2w, b2b=b2b,
        ln2g=jnp.ones((1, EMB), jnp.float32), ln2b=jnp.zeros((1, EMB), jnp.float32))


def reference(x, w, p):
    """Pure-JAX reference mirroring the PyTorch forward.

    Uses the same bf16 matmul-operand quantization as the kernel (a signed-off
    accuracy trade-off) so the comparison isolates kernel correctness."""
    wv = w.reshape(1, WD)

    def ln(v, g, b):
        mu = jnp.mean(v, -1, keepdims=True)
        var = jnp.mean(jnp.square(v - mu), -1, keepdims=True)
        return (v - mu) / jnp.sqrt(var + EPS) * g + b

    h = (wv @ p["g1w"] + p["g1b"]) * ln(x, p["ln1g"], p["ln1b"]) + (wv @ p["b1w"] + p["b1b"])
    h1 = jnp.dot(h.astype(jnp.bfloat16), p["fc1w"].astype(jnp.bfloat16),
                 preferred_element_type=jnp.float32) + p["fc1b"]
    h1 = jnp.maximum(h1, 0.0)
    h2 = jnp.dot(h1.astype(jnp.bfloat16), p["fc2w"].astype(jnp.bfloat16),
                 preferred_element_type=jnp.float32) + p["fc2b"]
    return (wv @ p["g2w"] + p["g2b"]) * ln(h2, p["ln2g"], p["ln2b"]) + (wv @ p["b2w"] + p["b2b"])


if __name__ == "__main__":
    root = jax.random.PRNGKey(0)
    kx, kw, kp = jax.random.split(root, 3)
    x = jax.random.normal(kx, (BATCH, SEQ, MID), jnp.float32)   # (bs, seq, mid_dim)
    w = jax.random.normal(kw, (WD,), jnp.float32)               # SLN conditioning vector

    raw = init_raw_params(kp)
    params = prepare_params(raw)                                # one-time bf16 cast + fold

    fwd = jax.jit(cnnenc_forward)
    out = jax.block_until_ready(fwd(x, w, params))
    ref = reference(x, w, raw)

    assert out.shape == (BATCH, SEQ, EMB), out.shape
    if not jnp.allclose(out, ref, atol=2e-3, rtol=2e-3):
        err = jnp.max(jnp.abs(out - ref))
        raise AssertionError(f"Pallas kernel mismatch vs JAX reference (max abs err {err})")
    print("KERNEL_OK")
</pallas_src>

<mosaic_0001>
module attributes {stable_mosaic.version = 11 : i64} {
  func.func @cnnenc_fwd_kernel(%arg0: i32, %arg1: memref<128x256xf32, #tpu.memory_space<vmem>>, %arg2: memref<1x768xf32, #tpu.memory_space<vmem>>, %arg3: memref<256x512xbf16, #tpu.memory_space<vmem>>, %arg4: memref<1x512xf32, #tpu.memory_space<vmem>>, %arg5: memref<512x128xbf16, #tpu.memory_space<vmem>>, %arg6: memref<1x128xf32, #tpu.memory_space<vmem>>, %arg7: memref<128x128xf32, #tpu.memory_space<vmem>>) attributes {dimension_semantics = [#tpu.dimension_semantics<parallel>], iteration_bounds = array<i64: 4>, scalar_prefetch = 0 : i64, scratch_operands = 0 : i64, tpu.core_type = #tpu.core_type<tc>, window_params = [{transform_indices = @transform_0, window_bounds = array<i64: 128, 256>}, {pipeline_mode = #tpu.pipeline_mode<synchronous>, transform_indices = @transform_1, window_bounds = array<i64: 1, 768>}, {pipeline_mode = #tpu.pipeline_mode<synchronous>, transform_indices = @transform_2, window_bounds = array<i64: 256, 512>}, {pipeline_mode = #tpu.pipeline_mode<synchronous>, transform_indices = @transform_3, window_bounds = array<i64: 1, 512>}, {pipeline_mode = #tpu.pipeline_mode<synchronous>, transform_indices = @transform_4, window_bounds = array<i64: 512, 128>}, {pipeline_mode = #tpu.pipeline_mode<synchronous>, transform_indices = @transform_5, window_bounds = array<i64: 1, 128>}, {transform_indices = @transform_6, window_bounds = array<i64: 128, 128>}]} {
    %c0 = arith.constant 0 : index
    %c0_0 = arith.constant 0 : index
    %0 = vector.load %arg1[%c0, %c0_0] : memref<128x256xf32, #tpu.memory_space<vmem>>, vector<128x256xf32>
    %c0_1 = arith.constant 0 : index
    %c0_2 = arith.constant 0 : index
    %1 = vector.load %arg2[%c0_1, %c0_2] : memref<1x768xf32, #tpu.memory_space<vmem>>, vector<1x256xf32>
    %c0_3 = arith.constant 0 : index
    %c256 = arith.constant 256 : index
    %2 = vector.load %arg2[%c0_3, %c256] : memref<1x768xf32, #tpu.memory_space<vmem>>, vector<1x256xf32>
    %c0_4 = arith.constant 0 : index
    %c512 = arith.constant 512 : index
    %3 = vector.load %arg2[%c0_4, %c512] : memref<1x768xf32, #tpu.memory_space<vmem>>, vector<1x128xf32>
    %c0_5 = arith.constant 0 : index
    %c640 = arith.constant 640 : index
    %4 = vector.load %arg2[%c0_5, %c640] : memref<1x768xf32, #tpu.memory_space<vmem>>, vector<1x128xf32>
    %cst = arith.constant dense<0.000000e+00> : vector<128xf32>
    %5 = vector.multi_reduction <add>, %0, %cst [1] : vector<128x256xf32> to vector<128xf32>
    %6 = vector.shape_cast %5 : vector<128xf32> to vector<128x1xf32>
    %cst_6 = arith.constant 2.560000e+02 : f32
    %7 = vector.broadcast %cst_6 : f32 to vector<128x1xf32>
    %8 = arith.divf %6, %7 : vector<128x1xf32>
    %9 = vector.broadcast %8 : vector<128x1xf32> to vector<128x256xf32>
    %10 = arith.subf %0, %9 : vector<128x256xf32>
    %11 = arith.mulf %10, %10 : vector<128x256xf32>
    %cst_7 = arith.constant dense<0.000000e+00> : vector<128xf32>
    %12 = vector.multi_reduction <add>, %11, %cst_7 [1] : vector<128x256xf32> to vector<128xf32>
    %13 = vector.shape_cast %12 : vector<128xf32> to vector<128x1xf32>
    %cst_8 = arith.constant 2.560000e+02 : f32
    %14 = vector.broadcast %cst_8 : f32 to vector<128x1xf32>
    %15 = arith.divf %13, %14 : vector<128x1xf32>
    %cst_9 = arith.constant 9.99999974E-6 : f32
    %16 = vector.broadcast %cst_9 : f32 to vector<128x1xf32>
    %17 = arith.addf %15, %16 : vector<128x1xf32>
    %18 = math.rsqrt %17 : vector<128x1xf32>
    %19 = vector.broadcast %18 : vector<128x1xf32> to vector<128x256xf32>
    %20 = arith.mulf %10, %19 : vector<128x256xf32>
    %21 = vector.broadcast %1 : vector<1x256xf32> to vector<128x256xf32>
    %22 = arith.mulf %21, %20 : vector<128x256xf32>
    %23 = vector.broadcast %2 : vector<1x256xf32> to vector<128x256xf32>
    %24 = arith.addf %22, %23 : vector<128x256xf32>
    %25 = arith.truncf %24 : vector<128x256xf32> to vector<128x256xbf16>
    %c0_10 = arith.constant 0 : index
    %c0_11 = arith.constant 0 : index
    %26 = vector.load %arg3[%c0_10, %c0_11] : memref<256x512xbf16, #tpu.memory_space<vmem>>, vector<256x512xbf16>
    %cst_12 = arith.constant dense<0.000000e+00> : vector<128x512xf32>
    %27 = tpu.matmul %25, %26, %cst_12 {dimension_numbers = #tpu.dot_dimension_numbers<[1], [0], [0], [1], [0, 0, 1, 1], [], []>} : vector<128x256xbf16>, vector<256x512xbf16>, vector<128x512xf32> -> vector<128x512xf32>
    %c0_13 = arith.constant 0 : index
    %c0_14 = arith.constant 0 : index
    %28 = vector.load %arg4[%c0_13, %c0_14] : memref<1x512xf32, #tpu.memory_space<vmem>>, vector<1x512xf32>
    %29 = vector.broadcast %28 : vector<1x512xf32> to vector<128x512xf32>
    %30 = arith.addf %27, %29 : vector<128x512xf32>
    %cst_15 = arith.constant 0.000000e+00 : f32
    %31 = vector.broadcast %cst_15 : f32 to vector<128x512xf32>
    %32 = arith.maximumf %30, %31 : vector<128x512xf32>
    %33 = arith.truncf %32 : vector<128x512xf32> to vector<128x512xbf16>
    %c0_16 = arith.constant 0 : index
    %c0_17 = arith.constant 0 : index
    %34 = vector.load %arg5[%c0_16, %c0_17] : memref<512x128xbf16, #tpu.memory_space<vmem>>, vector<512x128xbf16>
    %cst_18 = arith.constant dense<0.000000e+00> : vector<128x128xf32>
    %35 = tpu.matmul %33, %34, %cst_18 {dimension_numbers = #tpu.dot_dimension_numbers<[1], [0], [0], [1], [0, 0, 1, 1], [], []>} : vector<128x512xbf16>, vector<512x128xbf16>, vector<128x128xf32> -> vector<128x128xf32>
    %c0_19 = arith.constant 0 : index
    %c0_20 = arith.constant 0 : index
    %36 = vector.load %arg6[%c0_19, %c0_20] : memref<1x128xf32, #tpu.memory_space<vmem>>, vector<1x128xf32>
    %37 = vector.broadcast %36 : vector<1x128xf32> to vector<128x128xf32>
    %38 = arith.addf %35, %37 : vector<128x128xf32>
    %cst_21 = arith.constant dense<0.000000e+00> : vector<128xf32>
    %39 = vector.multi_reduction <add>, %38, %cst_21 [1] : vector<128x128xf32> to vector<128xf32>
    %40 = vector.shape_cast %39 : vector<128xf32> to vector<128x1xf32>
    %cst_22 = arith.constant 1.280000e+02 : f32
    %41 = vector.broadcast %cst_22 : f32 to vector<128x1xf32>
    %42 = arith.divf %40, %41 : vector<128x1xf32>
    %43 = vector.broadcast %42 : vector<128x1xf32> to vector<128x128xf32>
    %44 = arith.subf %38, %43 : vector<128x128xf32>
    %45 = arith.mulf %44, %44 : vector<128x128xf32>
    %cst_23 = arith.constant dense<0.000000e+00> : vector<128xf32>
    %46 = vector.multi_reduction <add>, %45, %cst_23 [1] : vector<128x128xf32> to vector<128xf32>
    %47 = vector.shape_cast %46 : vector<128xf32> to vector<128x1xf32>
    %cst_24 = arith.constant 1.280000e+02 : f32
    %48 = vector.broadcast %cst_24 : f32 to vector<128x1xf32>
    %49 = arith.divf %47, %48 : vector<128x1xf32>
    %cst_25 = arith.constant 9.99999974E-6 : f32
    %50 = vector.broadcast %cst_25 : f32 to vector<128x1xf32>
    %51 = arith.addf %49, %50 : vector<128x1xf32>
    %52 = math.rsqrt %51 : vector<128x1xf32>
    %53 = vector.broadcast %52 : vector<128x1xf32> to vector<128x128xf32>
    %54 = arith.mulf %44, %53 : vector<128x128xf32>
    %55 = vector.broadcast %3 : vector<1x128xf32> to vector<128x128xf32>
    %56 = arith.mulf %55, %54 : vector<128x128xf32>
    %57 = vector.broadcast %4 : vector<1x128xf32> to vector<128x128xf32>
    %58 = arith.addf %56, %57 : vector<128x128xf32>
    %c0_26 = arith.constant 0 : index
    %c0_27 = arith.constant 0 : index
    %59 = vector.load %arg7[%c0_26, %c0_27] : memref<128x128xf32, #tpu.memory_space<vmem>>, vector<128x128xf32>
    tpu.vector_store %arg7[%c0_26, %c0_27], %58 {strides = array<i32>} : memref<128x128xf32, #tpu.memory_space<vmem>>, vector<128x128xf32>,
    return
  }
  func.func @transform_0(%arg0: i32) -> (i32, i32) {
    %c0_i32 = arith.constant 0 : i32
    %c0_i32_0 = arith.constant 0 : i32
    return %arg0, %c0_i32 : i32, i32
  }
  func.func @transform_1(%arg0: i32) -> (i32, i32) {
    %c0_i32 = arith.constant 0 : i32
    %c0_i32_0 = arith.constant 0 : i32
    %c0_i32_1 = arith.constant 0 : i32
    return %c0_i32, %c0_i32_0 : i32, i32
  }
  func.func @transform_2(%arg0: i32) -> (i32, i32) {
    %c0_i32 = arith.constant 0 : i32
    %c0_i32_0 = arith.constant 0 : i32
    %c0_i32_1 = arith.constant 0 : i32
    return %c0_i32, %c0_i32_0 : i32, i32
  }
  func.func @transform_3(%arg0: i32) -> (i32, i32) {
    %c0_i32 = arith.constant 0 : i32
    %c0_i32_0 = arith.constant 0 : i32
    %c0_i32_1 = arith.constant 0 : i32
    return %c0_i32, %c0_i32_0 : i32, i32
  }
  func.func @transform_4(%arg0: i32) -> (i32, i32) {
    %c0_i32 = arith.constant 0 : i32
    %c0_i32_0 = arith.constant 0 : i32
    %c0_i32_1 = arith.constant 0 : i32
    return %c0_i32, %c0_i32_0 : i32, i32
  }
  func.func @transform_5(%arg0: i32) -> (i32, i32) {
    %c0_i32 = arith.constant 0 : i32
    %c0_i32_0 = arith.constant 0 : i32
    %c0_i32_1 = arith.constant 0 : i32
    return %c0_i32, %c0_i32_0 : i32, i32
  }
  func.func @transform_6(%arg0: i32) -> (i32, i32) {
    %c0_i32 = arith.constant 0 : i32
    %c0_i32_0 = arith.constant 0 : i32
    return %arg0, %c0_i32 : i32, i32
  }
}

</mosaic_0001>

<llo_original>
// kernel: cnnenc_forward.1
$region0: #{cnnenc_forward.1}
  #allocation0 [shape = 'u32[]', space=smem, size = 0x4, offset = 0x4, fixed_abs, tag = 'smem constant byte address 0x4 - core index']
  #allocation1 [shape = 'u32[72,128]{1,0:T(1,128)}', space=vmem, size = 0x9000, scoped, tag = 'internal scratch']
  %s0 = inlined_call_operand.hbm [shape: f32[512,256], index: 0, kind: input, shape index: {}]
  %s1 = inlined_call_operand.vmem [shape: f32[1,768], index: 1, kind: input, shape index: {}]
  %s2 = inlined_call_operand.hbm [shape: bf16[256,512], index: 2, kind: input, shape index: {}]
  %s3 = inlined_call_operand.vmem [shape: f32[1,512], index: 3, kind: input, shape index: {}]
  %s4 = inlined_call_operand.hbm [shape: bf16[512,128], index: 4, kind: input, shape index: {}]
  %s5 = inlined_call_operand.vmem [shape: f32[1,128], index: 5, kind: input, shape index: {}]
  %s6 = inlined_call_operand.hbm [shape: f32[512,128], index: 6, kind: output, shape index: {}]
  %s7 = sld [smem:[#allocation0]]
  $region69: #{cnnenc_forward.1} parent=0
    _
  %s9 = ssub.s32 1, %s7
  %s10 = scalar_select 0, %s9, %s7
  $region1: #{cnnenc_forward.1} parent=0
    #allocation2 [shape = 'u8[262144]{0}', space=vmem, size = 0x40000, scoped, tag = 'input window, operand 0']
    #allocation3 [shape = 's32[2]{0}', space=sflag, size = 0x8, scoped, tag = 'scoped memory for cnnenc_forward.1']
    #allocation4 [shape = 's32[2]{0}', space=sflag, size = 0x8, scoped, tag = 'scoped memory for cnnenc_forward.1']
    #allocation5 [shape = 'u8[262144]{0}', space=vmem, size = 0x40000, scoped, tag = 'input window, operand 2, single buffered']
    #allocation6 [shape = 's32[1]{0}', space=sflag, size = 0x4, scoped, tag = 'scoped memory for cnnenc_forward.1']
    #allocation7 [shape = 'u8[131072]{0}', space=vmem, size = 0x20000, scoped, tag = 'input window, operand 4, single buffered']
    #allocation8 [shape = 'u8[131072]{0}', space=vmem, size = 0x20000, scoped, tag = 'output window, operand 0']
    %11 = vsyncpa [#allocation3], 0
    %s12 = scalar_lea.sflag [#allocation3], 1
    %13 = vsyncpa %s12, 0
    %14 = vsyncpa [#allocation6], 0
    %15 = vsyncpa [#allocation4], 0
    %s16 = scalar_lea.sflag [#allocation4], 1
    %17 = vsyncpa %s16, 0
    loop: start=0, step=1, limit=6
    $region2: #{cnnenc_forward.1} parent=1 // loop_pre_header
      _
    $region3: #{cnnenc_forward.1} parent=1 // loop_header
      %s19 = sphi 0, %s23
      %p20 = scmp.ge.s32.totalorder %s19, 6
      %s29 = sphi 0, %s31
      %s32 = sphi 0, %s29
      %s33 = sphi 0, %s32
      %s49 = sphi 0, %s33
      %s53 = sphi 0, %s53
      %s55 = sphi 0, %s53
      %s56 = sphi 0, %s55
      %s70 = sphi 0, %s56
      %s74 = sphi 0, %s74
      %s76 = sphi 0, %s74
      %s77 = sphi 0, %s76
      %s91 = sphi 0, %s77
      %s95 = sphi 0, %s95
      %s97 = sphi 0, %s95
      %s98 = sphi 0, %s97
      %s112 = sphi 0, %s98
      %s116 = sphi 0, %s116
      %s118 = sphi 0, %s116
      %s119 = sphi 0, %s118
      %s133 = sphi 0, %s119
      %s137 = sphi 0, %s137
      %s139 = sphi 0, %s137
      %s140 = sphi 0, %s139
      %s154 = sphi 0, %s140
      %s160 = sphi 0, %s162
      %s163 = sphi 0, %s160
      %s164 = sphi 0, %s163
      %s180 = sphi 0, %s164
    $region4: #{cnnenc_forward.1} parent=1 // loop_header_branch
      %22 = sbr.rel (%p20) target = $region8
    $region5: #{cnnenc_forward.1} parent=1 // loop_body
      %s24 = ssub.s32 %s19, 1
      %s25 = ssub.s32 %s19, 2
      %s26 = sadd.s32 %s19, 1
      %s27 = ssub.s32 %s19, %s26
      %p28 = scmp.eq.s32.totalorder %s27, 0
      %s30 = sadd.s32 %s29, 1
      %s31 = scalar_select %p28, %s29, %s30
      %p34 = pneg %p28
      %p35 = scmp.eq.s32.totalorder %s19, 3
      %p36 = por %p34, %p35
      %p37 = scmp.ne.s32.totalorder %s29, %s32
      %p38 = scmp.eq.s32.totalorder %s19, 0
      %p39 = por %p37, %p38
      %p40 = scmp.ne.s32.totalorder %s29, %s32
      %p41 = scmp.eq.s32.totalorder %s24, 3
      %p42 = por %p40, %p41
      %p43 = scmp.ne.s32.totalorder %s32, %s33
      %p44 = scmp.eq.s32.totalorder %s24, 0
      %p45 = por %p43, %p44
      %p46 = scmp.ne.s32.totalorder %s32, %s33
      %p47 = scmp.eq.s32.totalorder %s25, 3
      %p48 = por %p46, %p47
      %p50 = scmp.ne.s32.totalorder %s33, %s49
      %p51 = scmp.eq.s32.totalorder %s25, 0
      %p52 = por %p50, %p51
      %s54 = sadd.s32 %s53, 1
      %p57 = scmp.eq.s32.totalorder %s19, 3
      %p58 = scmp.ne.s32.totalorder %s53, %s55
      %p59 = scmp.eq.s32.totalorder %s19, 0
      %p60 = por %p58, %p59
      %p61 = scmp.ne.s32.totalorder %s53, %s55
      %p62 = scmp.eq.s32.totalorder %s24, 3
      %p63 = por %p61, %p62
      %p64 = scmp.ne.s32.totalorder %s55, %s56
      %p65 = scmp.eq.s32.totalorder %s24, 0
      %p66 = por %p64, %p65
      %p67 = scmp.ne.s32.totalorder %s55, %s56
      %p68 = scmp.eq.s32.totalorder %s25, 3
      %p69 = por %p67, %p68
      %p71 = scmp.ne.s32.totalorder %s56, %s70
      %p72 = scmp.eq.s32.totalorder %s25, 0
      %p73 = por %p71, %p72
      %s75 = sadd.s32 %s74, 1
      %p78 = scmp.eq.s32.totalorder %s19, 3
      %p79 = scmp.ne.s32.totalorder %s74, %s76
      %p80 = scmp.eq.s32.totalorder %s19, 0
      %p81 = por %p79, %p80
      %p82 = scmp.ne.s32.totalorder %s74, %s76
      %p83 = scmp.eq.s32.totalorder %s24, 3
      %p84 = por %p82, %p83
      %p85 = scmp.ne.s32.totalorder %s76, %s77
      %p86 = scmp.eq.s32.totalorder %s24, 0
      %p87 = por %p85, %p86
      %p88 = scmp.ne.s32.totalorder %s76, %s77
      %p89 = scmp.eq.s32.totalorder %s25, 3
      %p90 = por %p88, %p89
      %p92 = scmp.ne.s32.totalorder %s77, %s91
      %p93 = scmp.eq.s32.totalorder %s25, 0
      %p94 = por %p92, %p93
      %s96 = sadd.s32 %s95, 1
      %p99 = scmp.eq.s32.totalorder %s19, 3
      %p100 = scmp.ne.s32.totalorder %s95, %s97
      %p101 = scmp.eq.s32.totalorder %s19, 0
      %p102 = por %p100, %p101
      %p103 = scmp.ne.s32.totalorder %s95, %s97
      %p104 = scmp.eq.s32.totalorder %s24, 3
      %p105 = por %p103, %p104
      %p106 = scmp.ne.s32.totalorder %s97, %s98
      %p107 = scmp.eq.s32.totalorder %s24, 0
      %p108 = por %p106, %p107
      %p109 = scmp.ne.s32.totalorder %s97, %s98
      %p110 = scmp.eq.s32.totalorder %s25, 3
      %p111 = por %p109, %p110
      %p113 = scmp.ne.s32.totalorder %s98, %s112
      %p114 = scmp.eq.s32.totalorder %s25, 0
      %p115 = por %p113, %p114
      %s117 = sadd.s32 %s116, 1
      %p120 = scmp.eq.s32.totalorder %s19, 3
      %p121 = scmp.ne.s32.totalorder %s116, %s118
      %p122 = scmp.eq.s32.totalorder %s19, 0
      %p123 = por %p121, %p122
      %p124 = scmp.ne.s32.totalorder %s116, %s118
      %p125 = scmp.eq.s32.totalorder %s24, 3
      %p126 = por %p124, %p125
      %p127 = scmp.ne.s32.totalorder %s118, %s119
      %p128 = scmp.eq.s32.totalorder %s24, 0
      %p129 = por %p127, %p128
      %p130 = scmp.ne.s32.totalorder %s118, %s119
      %p131 = scmp.eq.s32.totalorder %s25, 3
      %p132 = por %p130, %p131
      %p134 = scmp.ne.s32.totalorder %s119, %s133
      %p135 = scmp.eq.s32.totalorder %s25, 0
      %p136 = por %p134, %p135
      %s138 = sadd.s32 %s137, 1
      %p141 = scmp.eq.s32.totalorder %s19, 3
      %p142 = scmp.ne.s32.totalorder %s137, %s139
      %p143 = scmp.eq.s32.totalorder %s19, 0
      %p144 = por %p142, %p143
      %p145 = scmp.ne.s32.totalorder %s137, %s139
      %p146 = scmp.eq.s32.totalorder %s24, 3
      %p147 = por %p145, %p146
      %p148 = scmp.ne.s32.totalorder %s139, %s140
      %p149 = scmp.eq.s32.totalorder %s24, 0
      %p150 = por %p148, %p149
      %p151 = scmp.ne.s32.totalorder %s139, %s140
      %p152 = scmp.eq.s32.totalorder %s25, 3
      %p153 = por %p151, %p152
      %p155 = scmp.ne.s32.totalorder %s140, %s154
      %p156 = scmp.eq.s32.totalorder %s25, 0
      %p157 = por %p155, %p156
      %s158 = ssub.s32 %s19, %s26
      %p159 = scmp.eq.s32.totalorder %s158, 0
      %s161 = sadd.s32 %s160, 1
      %s162 = scalar_select %p159, %s160, %s161
      %p165 = pneg %p159
      %p166 = scmp.eq.s32.totalorder %s19, 3
      %p167 = por %p165, %p166
      %p168 = scmp.ne.s32.totalorder %s160, %s163
      %p169 = scmp.eq.s32.totalorder %s19, 0
      %p170 = por %p168, %p169
      %p171 = scmp.ne.s32.totalorder %s160, %s163
      %p172 = scmp.eq.s32.totalorder %s24, 3
      %p173 = por %p171, %p172
      %p174 = scmp.ne.s32.totalorder %s163, %s164
      %p175 = scmp.eq.s32.totalorder %s24, 0
      %p176 = por %p174, %p175
      %p177 = scmp.ne.s32.totalorder %s163, %s164
      %p178 = scmp.eq.s32.totalorder %s25, 3
      %p179 = por %p177, %p178
      %p181 = scmp.ne.s32.totalorder %s164, %s180
      %p182 = scmp.eq.s32.totalorder %s25, 0
      %p183 = por %p181, %p182
      %p184 = scmp.le.s32.totalorder 1, %s19
      %p185 = scmp.lt.s32.totalorder %s19, 5
      %p186 = pnand %p184, %p185
      %p187 = pneg %p186
      // Predicated region
      $region9: #{cnnenc_forward.1} parent=5 // pred_check
        _
      $region10: #{cnnenc_forward.1} parent=5 // pred_check_branch
        %189 = sbr.rel (%p186) target = $region12
      $region11: #{cnnenc_forward.1} parent=5 // pred_region
        %s190 = ssub.s32 %s19, 1
        // Predicated region
        $region13: #{cnnenc_forward.1} parent=11 // pred_check
          %p191 = pneg %p66
        $region14: #{cnnenc_forward.1} parent=11 // pred_check_branch
          %193 = sbr.rel (%p191) target = $region16
        $region15: #{cnnenc_forward.1} parent=11 // pred_region
          _
        $region16: #{cnnenc_forward.1} parent=11 // pred_fallthru
          _
        // Predicated region
        $region17: #{cnnenc_forward.1} parent=11 // pred_check
          %p194 = pneg %p87
        $region18: #{cnnenc_forward.1} parent=11 // pred_check_branch
          %196 = sbr.rel (%p194) target = $region20
        $region19: #{cnnenc_forward.1} parent=11 // pred_region
          %198 = vsyncadd [#allocation6], 0
          %s199 = sshll.u32 %s2, 4
          %s200 = int_to_ptr.hbm [resolvable:$true] %s199
          %s201 = sshll.u32 [#allocation5], 4
          %s202 = int_to_ptr.vmem [resolvable:$true] %s201
          %207 = dma.hbm_to_vmem [thread:$0]  %s200, 8192, %s202, [#allocation6], 256, 256, 16
        $region20: #{cnnenc_forward.1} parent=11 // pred_fallthru
          _
        // Predicated region
        $region21: #{cnnenc_forward.1} parent=11 // pred_check
          %p208 = pneg %p108
        $region22: #{cnnenc_forward.1} parent=11 // pred_check_branch
          %210 = sbr.rel (%p208) target = $region24
        $region23: #{cnnenc_forward.1} parent=11 // pred_region
          _
        $region24: #{cnnenc_forward.1} parent=11 // pred_fallthru
          _
        // Predicated region
        $region25: #{cnnenc_forward.1} parent=11 // pred_check
          %p211 = pneg %p129
        $region26: #{cnnenc_forward.1} parent=11 // pred_check_branch
          %213 = sbr.rel (%p211) target = $region28
        $region27: #{cnnenc_forward.1} parent=11 // pred_region
          %215 = vsyncadd [#allocation6], 0
          %s216 = sshll.u32 %s4, 4
          %s217 = int_to_ptr.hbm [resolvable:$true] %s216
          %s218 = sshll.u32 [#allocation7], 4
          %s219 = int_to_ptr.vmem [resolvable:$true] %s218
          %224 = dma.hbm_to_vmem [thread:$0]  %s217, 4096, %s219, [#allocation6], 64, 64, 4
        $region28: #{cnnenc_forward.1} parent=11 // pred_fallthru
          _
        // Predicated region
        $region29: #{cnnenc_forward.1} parent=11 // pred_check
          %p225 = pneg %p150
        $region30: #{cnnenc_forward.1} parent=11 // pred_check_branch
          %227 = sbr.rel (%p225) target = $region32
        $region31: #{cnnenc_forward.1} parent=11 // pred_region
          _
        $region32: #{cnnenc_forward.1} parent=11 // pred_fallthru
          _
      $region12: #{cnnenc_forward.1} parent=5 // pred_fallthru
        _
      %p228 = scmp.lt.s32.totalorder %s19, 4
      // Predicated region
      $region33: #{cnnenc_forward.1} parent=5 // pred_check
        %p229 = pneg %p228
      $region34: #{cnnenc_forward.1} parent=5 // pred_check_branch
        %231 = sbr.rel (%p229) target = $region36
      $region35: #{cnnenc_forward.1} parent=5 // pred_region
        // Predicated region
        $region37: #{cnnenc_forward.1} parent=35 // pred_check
          %p232 = pneg %p39
        $region38: #{cnnenc_forward.1} parent=35 // pred_check_branch
          %234 = sbr.rel (%p232) target = $region40
        $region39: #{cnnenc_forward.1} parent=35 // pred_region
          %s235 = sand.u32 %s29, 1
          %s236 = scalar_lea.sflag [#allocation3], %s235
          %s237 = sand.u32 %s29, 1
          %s238 = smul.addr %s237, 256
          %s239 = scalar_lea.vmem [#allocation2], %s238
          %s240 = smul.u32 16, %s19
          %242 = vsyncadd %s236, 0
          %s243 = smul.addr %s240, 2
          %s244 = smul.addr %s243, 8
          %s245 = scalar_lea.hbm %s0, %s244
          %s246 = sshll.u32 %s245, 4
          %s247 = int_to_ptr.hbm [resolvable:$true] %s246
          %s248 = sshll.u32 %s239, 4
          %s249 = int_to_ptr.vmem [resolvable:$true] %s248
          %254 = dma.hbm_to_vmem [thread:$0]  %s247, 4096, %s249, %s236, 256, 256, 16
        $region40: #{cnnenc_forward.1} parent=35 // pred_fallthru
          _
      $region36: #{cnnenc_forward.1} parent=5 // pred_fallthru
        _
      %p255 = scmp.le.s32.totalorder 1, %s19
      %p256 = scmp.lt.s32.totalorder %s19, 5
      %p257 = pnand %p255, %p256
      %p258 = pneg %p257
      // Predicated region
      $region41: #{cnnenc_forward.1} parent=5 // pred_check
        _
      $region42: #{cnnenc_forward.1} parent=5 // pred_check_branch
        %260 = sbr.rel (%p257) target = $region44
      $region43: #{cnnenc_forward.1} parent=5 // pred_region
        %s261 = ssub.s32 %s19, 1
        %s262 = sand.u32 %s32, 1
        %s263 = scalar_lea.sflag [#allocation3], %s262
        %s264 = sand.u32 %s32, 1
        %s265 = smul.addr %s264, 256
        %s266 = scalar_lea.vmem [#allocation2], %s265
        // Predicated region
        $region45: #{cnnenc_forward.1} parent=43 // pred_check
          %p267 = pneg %p45
        $region46: #{cnnenc_forward.1} parent=43 // pred_check_branch
          %269 = sbr.rel (%p267) target = $region48
        $region47: #{cnnenc_forward.1} parent=43 // pred_region
          %271 = dma.done %s263, 4096
        $region48: #{cnnenc_forward.1} parent=43 // pred_fallthru
          _
        // Predicated region
        $region49: #{cnnenc_forward.1} parent=43 // pred_check
          %p272 = pneg %p87
        $region50: #{cnnenc_forward.1} parent=43 // pred_check_branch
          %274 = sbr.rel (%p272) target = $region52
        $region51: #{cnnenc_forward.1} parent=43 // pred_region
          %276 = dma.done [#allocation6], 8192
        $region52: #{cnnenc_forward.1} parent=43 // pred_fallthru
          _
        // Predicated region
        $region53: #{cnnenc_forward.1} parent=43 // pred_check
          %p277 = pneg %p129
        $region54: #{cnnenc_forward.1} parent=43 // pred_check_branch
          %279 = sbr.rel (%p277) target = $region56
        $region55: #{cnnenc_forward.1} parent=43 // pred_region
          %281 = dma.done [#allocation6], 4096
        $region56: #{cnnenc_forward.1} parent=43 // pred_fallthru
          _
        %s282 = sand.u32 %s32, 1
        %s283 = scalar_lea.sflag [#allocation3], %s282
        %s284 = sand.u32 %s32, 1
        %s285 = smul.addr %s284, 256
        %s286 = scalar_lea.vmem [#allocation2], %s285
        %p287 = pneg %p45
        %p288 = pneg %p42
        %p289 = pneg %p66
        %p290 = pneg %p63
        %p291 = pneg %p87
        %p292 = pneg %p84
        %p293 = pneg %p108
        %p294 = pneg %p105
        %p295 = pneg %p129
        %p296 = pneg %p126
        %p297 = pneg %p150
        %p298 = pneg %p147
        %p299 = pneg %p176
        %p300 = pneg %p173
        %s301 = sand.u32 %s163, 1
        %s302 = scalar_lea.sflag [#allocation4], %s301
        %s303 = sand.u32 %s163, 1
        %s304 = smul.addr %s303, 128
        %s305 = scalar_lea.vmem [#allocation8], %s304
        %s306 = smul.u32 16, %s24
        %s307 = smul.u32 16, %s24
        %v308 = vld [vmem:[%s266] sm:$0xff]
        %v309 = vld [vmem:[%s266 + $0x8] sm:$0xff]
        %v310 = vld [vmem:[%s266 + $0x10] sm:$0xff]
        %v311 = vld [vmem:[%s266 + $0x18] sm:$0xff]
        %v312 = vld [vmem:[%s266 + $0x20] sm:$0xff]
        %v313 = vld [vmem:[%s266 + $0x28] sm:$0xff]
        %v314 = vld [vmem:[%s266 + $0x30] sm:$0xff]
        %v315 = vld [vmem:[%s266 + $0x38] sm:$0xff]
        %v316 = vld [vmem:[%s266 + $0x40] sm:$0xff]
        %v317 = vld [vmem:[%s266 + $0x48] sm:$0xff]
        %v318 = vld [vmem:[%s266 + $0x50] sm:$0xff]
        %v319 = vld [vmem:[%s266 + $0x58] sm:$0xff]
        %v320 = vld [vmem:[%s266 + $0x60] sm:$0xff]
        %v321 = vld [vmem:[%s266 + $0x68] sm:$0xff]
        %v322 = vld [vmem:[%s266 + $0x70] sm:$0xff]
        %v323 = vld [vmem:[%s266 + $0x78] sm:$0xff]
        %v324 = vld [vmem:[%s266 + $0x80] sm:$0xff]
        %v325 = vld [vmem:[%s266 + $0x88] sm:$0xff]
        %v326 = vld [vmem:[%s266 + $0x90] sm:$0xff]
        %v327 = vld [vmem:[%s266 + $0x98] sm:$0xff]
        %v328 = vld [vmem:[%s266 + $0xa0] sm:$0xff]
        %v329 = vld [vmem:[%s266 + $0xa8] sm:$0xff]
        %v330 = vld [vmem:[%s266 + $0xb0] sm:$0xff]
        %v331 = vld [vmem:[%s266 + $0xb8] sm:$0xff]
        %v332 = vld [vmem:[%s266 + $0xc0] sm:$0xff]
        %v333 = vld [vmem:[%s266 + $0xc8] sm:$0xff]
        %v334 = vld [vmem:[%s266 + $0xd0] sm:$0xff]
        %v335 = vld [vmem:[%s266 + $0xd8] sm:$0xff]
        %v336 = vld [vmem:[%s266 + $0xe0] sm:$0xff]
        %v337 = vld [vmem:[%s266 + $0xe8] sm:$0xff]
        %v338 = vld [vmem:[%s266 + $0xf0] sm:$0xff]
        %v339 = vld [vmem:[%s266 + $0xf8] sm:$0xff]
        %v340 = vld [vmem:[%s1] sm:$0x3]
        %v341 = vld [vmem:[%s1 + $0x2] sm:$0x3]
        %v342 = vld [vmem:[%s1 + $0x4] sm:$0x1]
        %v343 = vld [vmem:[%s1 + $0x5] sm:$0x1]
        %v344 = vadd.f32 %v308, %v309
        %345 = vadd.xlane.f32.xlu0 %v344
        %v346 = vpop.xlane.xlu0 %345
        %v347 = vadd.f32 %v310, %v311
        %348 = vadd.xlane.f32.xlu0 %v347
        %v349 = vpop.xlane.xlu0 %348
        %v350 = vadd.f32 %v312, %v313
        %351 = vadd.xlane.f32.xlu0 %v350
        %v352 = vpop.xlane.xlu0 %351
        %v353 = vadd.f32 %v314, %v315
        %354 = vadd.xlane.f32.xlu0 %v353
        %v355 = vpop.xlane.xlu0 %354
        %v356 = vadd.f32 %v316, %v317
        %357 = vadd.xlane.f32.xlu0 %v356
        %v358 = vpop.xlane.xlu0 %357
        %v359 = vadd.f32 %v318, %v319
        %360 = vadd.xlane.f32.xlu0 %v359
        %v361 = vpop.xlane.xlu0 %360
        %v362 = vadd.f32 %v320, %v321
        %363 = vadd.xlane.f32.xlu0 %v362
        %v364 = vpop.xlane.xlu0 %363
        %v365 = vadd.f32 %v322, %v323
        %366 = vadd.xlane.f32.xlu0 %v365
        %v367 = vpop.xlane.xlu0 %366
        %v368 = vadd.f32 %v324, %v325
        %369 = vadd.xlane.f32.xlu0 %v368
        %v370 = vpop.xlane.xlu0 %369
        %v371 = vadd.f32 %v326, %v327
        %372 = vadd.xlane.f32.xlu0 %v371
        %v373 = vpop.xlane.xlu0 %372
        %v374 = vadd.f32 %v328, %v329
        %375 = vadd.xlane.f32.xlu0 %v374
        %v376 = vpop.xlane.xlu0 %375
        %v377 = vadd.f32 %v330, %v331
        %378 = vadd.xlane.f32.xlu0 %v377
        %v379 = vpop.xlane.xlu0 %378
        %v380 = vadd.f32 %v332, %v333
        %381 = vadd.xlane.f32.xlu0 %v380
        %v382 = vpop.xlane.xlu0 %381
        %v383 = vadd.f32 %v334, %v335
        %384 = vadd.xlane.f32.xlu0 %v383
        %v385 = vpop.xlane.xlu0 %384
        %v386 = vadd.f32 %v336, %v337
        %387 = vadd.xlane.f32.xlu0 %v386
        %v388 = vpop.xlane.xlu0 %387
        %v389 = vadd.f32 %v338, %v339
        %390 = vadd.xlane.f32.xlu0 %v389
        %v391 = vpop.xlane.xlu0 %390
        %v392 = vrcp.pop 256.0
        %v393 = vmul.f32 256.0, %v392
        %v394 = vsub.f32 1.0, %v393
        %v395 = vmul.f32 %v392, %v394
        %v396 = vadd.f32 %v392, %v395
        %vm397 = vweird.f32 %v392
        %v398 = vsel %vm397, %v392, %v396
        %v399 = vmul.f32 %v346, %v398
        %v400 = vmul.f32 %v349, %v398
        %v401 = vmul.f32 %v352, %v398
        %v402 = vmul.f32 %v355, %v398
        %v403 = vmul.f32 %v358, %v398
        %v404 = vmul.f32 %v361, %v398
        %v405 = vmul.f32 %v364, %v398
        %v406 = vmul.f32 %v367, %v398
        %v407 = vmul.f32 %v370, %v398
        %v408 = vmul.f32 %v373, %v398
        %v409 = vmul.f32 %v376, %v398
        %v410 = vmul.f32 %v379, %v398
        %v411 = vmul.f32 %v382, %v398
        %v412 = vmul.f32 %v385, %v398
        %v413 = vmul.f32 %v388, %v398
        %v414 = vmul.f32 %v391, %v398
        %v415 = vsub.f32 %v308, %v399
        %v416 = vsub.f32 %v309, %v399
        %v417 = vsub.f32 %v310, %v400
        %v418 = vsub.f32 %v311, %v400
        %v419 = vsub.f32 %v312, %v401
        %v420 = vsub.f32 %v313, %v401
        %v421 = vsub.f32 %v314, %v402
        %v422 = vsub.f32 %v315, %v402
        %v423 = vsub.f32 %v316, %v403
        %v424 = vsub.f32 %v317, %v403
        %v425 = vsub.f32 %v318, %v404
        %v426 = vsub.f32 %v319, %v404
        %v427 = vsub.f32 %v320, %v405
        %v428 = vsub.f32 %v321, %v405
        %v429 = vsub.f32 %v322, %v406
        %v430 = vsub.f32 %v323, %v406
        %v431 = vsub.f32 %v324, %v407
        %v432 = vsub.f32 %v325, %v407
        %v433 = vsub.f32 %v326, %v408
        %v434 = vsub.f32 %v327, %v408
        %v435 = vsub.f32 %v328, %v409
        %v436 = vsub.f32 %v329, %v409
        %v437 = vsub.f32 %v330, %v410
        %v438 = vsub.f32 %v331, %v410
        %v439 = vsub.f32 %v332, %v411
        %v440 = vsub.f32 %v333, %v411
        %v441 = vsub.f32 %v334, %v412
        %v442 = vsub.f32 %v335, %v412
        %v443 = vsub.f32 %v336, %v413
        %v444 = vsub.f32 %v337, %v413
        %v445 = vsub.f32 %v338, %v414
        %v446 = vsub.f32 %v339, %v414
        %v447 = vmul.f32 %v415, %v415
        %v448 = vmul.f32 %v416, %v416
        %v449 = vmul.f32 %v417, %v417
        %v450 = vmul.f32 %v418, %v418
        %v451 = vmul.f32 %v419, %v419
        %v452 = vmul.f32 %v420, %v420
        %v453 = vmul.f32 %v421, %v421
        %v454 = vmul.f32 %v422, %v422
        %v455 = vmul.f32 %v423, %v423
        %v456 = vmul.f32 %v424, %v424
        %v457 = vmul.f32 %v425, %v425
        %v458 = vmul.f32 %v426, %v426
        %v459 = vmul.f32 %v427, %v427
        %v460 = vmul.f32 %v428, %v428
        %v461 = vmul.f32 %v429, %v429
        %v462 = vmul.f32 %v430, %v430
        %v463 = vmul.f32 %v431, %v431
        %v464 = vmul.f32 %v432, %v432
        %v465 = vmul.f32 %v433, %v433
        %v466 = vmul.f32 %v434, %v434
        %v467 = vmul.f32 %v435, %v435
        %v468 = vmul.f32 %v436, %v436
        %v469 = vmul.f32 %v437, %v437
        %v470 = vmul.f32 %v438, %v438
        %v471 = vmul.f32 %v439, %v439
        %v472 = vmul.f32 %v440, %v440
        %v473 = vmul.f32 %v441, %v441
        %v474 = vmul.f32 %v442, %v442
        %v475 = vmul.f32 %v443, %v443
        %v476 = vmul.f32 %v444, %v444
        %v477 = vmul.f32 %v445, %v445
        %v478 = vmul.f32 %v446, %v446
        %v479 = vadd.f32 %v447, %v448
        %480 = vadd.xlane.f32.xlu0 %v479
        %v481 = vpop.xlane.xlu0 %480
        %v482 = vadd.f32 %v449, %v450
        %483 = vadd.xlane.f32.xlu0 %v482
        %v484 = vpop.xlane.xlu0 %483
        %v485 = vadd.f32 %v451, %v452
        %486 = vadd.xlane.f32.xlu0 %v485
        %v487 = vpop.xlane.xlu0 %486
        %v488 = vadd.f32 %v453, %v454
        %489 = vadd.xlane.f32.xlu0 %v488
        %v490 = vpop.xlane.xlu0 %489
        %v491 = vadd.f32 %v455, %v456
        %492 = vadd.xlane.f32.xlu0 %v491
        %v493 = vpop.xlane.xlu0 %492
        %v494 = vadd.f32 %v457, %v458
        %495 = vadd.xlane.f32.xlu0 %v494
        %v496 = vpop.xlane.xlu0 %495
        %v497 = vadd.f32 %v459, %v460
        %498 = vadd.xlane.f32.xlu0 %v497
        %v499 = vpop.xlane.xlu0 %498
        %v500 = vadd.f32 %v461, %v462
        %501 = vadd.xlane.f32.xlu0 %v500
        %v502 = vpop.xlane.xlu0 %501
        %v503 = vadd.f32 %v463, %v464
        %504 = vadd.xlane.f32.xlu0 %v503
        %v505 = vpop.xlane.xlu0 %504
        %v506 = vadd.f32 %v465, %v466
        %507 = vadd.xlane.f32.xlu0 %v506
        %v508 = vpop.xlane.xlu0 %507
        %v509 = vadd.f32 %v467, %v468
        %510 = vadd.xlane.f32.xlu0 %v509
        %v511 = vpop.xlane.xlu0 %510
        %v512 = vadd.f32 %v469, %v470
        %513 = vadd.xlane.f32.xlu0 %v512
        %v514 = vpop.xlane.xlu0 %513
        %v515 = vadd.f32 %v471, %v472
        %516 = vadd.xlane.f32.xlu0 %v515
        %v517 = vpop.xlane.xlu0 %516
        %v518 = vadd.f32 %v473, %v474
        %519 = vadd.xlane.f32.xlu0 %v518
        %v520 = vpop.xlane.xlu0 %519
        %v521 = vadd.f32 %v475, %v476
        %522 = vadd.xlane.f32.xlu0 %v521
        %v523 = vpop.xlane.xlu0 %522
        %v524 = vadd.f32 %v477, %v478
        %525 = vadd.xlane.f32.xlu0 %v524
        %v526 = vpop.xlane.xlu0 %525
        %v527 = vmul.f32 %v481, %v398
        %v528 = vmul.f32 %v484, %v398
        %v529 = vmul.f32 %v487, %v398
        %v530 = vmul.f32 %v490, %v398
        %v531 = vmul.f32 %v493, %v398
        %v532 = vmul.f32 %v496, %v398
        %v533 = vmul.f32 %v499, %v398
        %v534 = vmul.f32 %v502, %v398
        %v535 = vmul.f32 %v505, %v398
        %v536 = vmul.f32 %v508, %v398
        %v537 = vmul.f32 %v511, %v398
        %v538 = vmul.f32 %v514, %v398
        %v539 = vmul.f32 %v517, %v398
        %v540 = vmul.f32 %v520, %v398
        %v541 = vmul.f32 %v523, %v398
        %v542 = vmul.f32 %v526, %v398
        %v543 = vadd.f32 %v527, 1e-05
        %v544 = vadd.f32 %v528, 1e-05
        %v545 = vadd.f32 %v529, 1e-05
        %v546 = vadd.f32 %v530, 1e-05
        %v547 = vadd.f32 %v531, 1e-05
        %v548 = vadd.f32 %v532, 1e-05
        %v549 = vadd.f32 %v533, 1e-05
        %v550 = vadd.f32 %v534, 1e-05
        %v551 = vadd.f32 %v535, 1e-05
        %v552 = vadd.f32 %v536, 1e-05
        %v553 = vadd.f32 %v537, 1e-05
        %v554 = vadd.f32 %v538, 1e-05
        %v555 = vadd.f32 %v539, 1e-05
        %v556 = vadd.f32 %v540, 1e-05
        %v557 = vadd.f32 %v541, 1e-05
        %v558 = vadd.f32 %v542, 1e-05
        %v559 = vrsqrt.pop %v543
        %v560 = vmul.f32 %v559, %v543
        %v561 = vmul.f32 %v560, %v559
        %v562 = vmul.f32 0.5, %v561
        %v563 = vsub.f32 1.5, %v562
        %v564 = vmul.f32 %v559, %v563
        %vm565 = vweird.f32 %v543
        %vm566 = vweird.f32 %v559
        %vm567 = vmor %vm565, %vm566
        %v568 = vsel %vm567, %v559, %v564
        %v569 = vrsqrt.pop %v544
        %v570 = vmul.f32 %v569, %v544
        %v571 = vmul.f32 %v570, %v569
        %v572 = vmul.f32 0.5, %v571
        %v573 = vsub.f32 1.5, %v572
        %v574 = vmul.f32 %v569, %v573
        %vm575 = vweird.f32 %v544
        %vm576 = vweird.f32 %v569
        %vm577 = vmor %vm575, %vm576
        %v578 = vsel %vm577, %v569, %v574
        %v579 = vrsqrt.pop %v545
        %v580 = vmul.f32 %v579, %v545
        %v581 = vmul.f32 %v580, %v579
        %v582 = vmul.f32 0.5, %v581
        %v583 = vsub.f32 1.5, %v582
        %v584 = vmul.f32 %v579, %v583
        %vm585 = vweird.f32 %v545
        %vm586 = vweird.f32 %v579
        %vm587 = vmor %vm585, %vm586
        %v588 = vsel %vm587, %v579, %v584
        %v589 = vrsqrt.pop %v546
        %v590 = vmul.f32 %v589, %v546
        %v591 = vmul.f32 %v590, %v589
        %v592 = vmul.f32 0.5, %v591
        %v593 = vsub.f32 1.5, %v592
        %v594 = vmul.f32 %v589, %v593
        %vm595 = vweird.f32 %v546
        %vm596 = vweird.f32 %v589
        %vm597 = vmor %vm595, %vm596
        %v598 = vsel %vm597, %v589, %v594
        %v599 = vrsqrt.pop %v547
        %v600 = vmul.f32 %v599, %v547
        %v601 = vmul.f32 %v600, %v599
        %v602 = vmul.f32 0.5, %v601
        %v603 = vsub.f32 1.5, %v602
        %v604 = vmul.f32 %v599, %v603
        %vm605 = vweird.f32 %v547
        %vm606 = vweird.f32 %v599
        %vm607 = vmor %vm605, %vm606
        %v608 = vsel %vm607, %v599, %v604
        %v609 = vrsqrt.pop %v548
        %v610 = vmul.f32 %v609, %v548
        %v611 = vmul.f32 %v610, %v609
        %v612 = vmul.f32 0.5, %v611
        %v613 = vsub.f32 1.5, %v612
        %v614 = vmul.f32 %v609, %v613
        %vm615 = vweird.f32 %v548
        %vm616 = vweird.f32 %v609
        %vm617 = vmor %vm615, %vm616
        %v618 = vsel %vm617, %v609, %v614
        %v619 = vrsqrt.pop %v549
        %v620 = vmul.f32 %v619, %v549
        %v621 = vmul.f32 %v620, %v619
        %v622 = vmul.f32 0.5, %v621
        %v623 = vsub.f32 1.5, %v622
        %v624 = vmul.f32 %v619, %v623
        %vm625 = vweird.f32 %v549
        %vm626 = vweird.f32 %v619
        %vm627 = vmor %vm625, %vm626
        %v628 = vsel %vm627, %v619, %v624
        %v629 = vrsqrt.pop %v550
        %v630 = vmul.f32 %v629, %v550
        %v631 = vmul.f32 %v630, %v629
        %v632 = vmul.f32 0.5, %v631
        %v633 = vsub.f32 1.5, %v632
        %v634 = vmul.f32 %v629, %v633
        %vm635 = vweird.f32 %v550
        %vm636 = vweird.f32 %v629
        %vm637 = vmor %vm635, %vm636
        %v638 = vsel %vm637, %v629, %v634
        %v639 = vrsqrt.pop %v551
        %v640 = vmul.f32 %v639, %v551
        %v641 = vmul.f32 %v640, %v639
        %v642 = vmul.f32 0.5, %v641
        %v643 = vsub.f32 1.5, %v642
        %v644 = vmul.f32 %v639, %v643
        %vm645 = vweird.f32 %v551
        %vm646 = vweird.f32 %v639
        %vm647 = vmor %vm645, %vm646
        %v648 = vsel %vm647, %v639, %v644
        %v649 = vrsqrt.pop %v552
        %v650 = vmul.f32 %v649, %v552
        %v651 = vmul.f32 %v650, %v649
        %v652 = vmul.f32 0.5, %v651
        %v653 = vsub.f32 1.5, %v652
        %v654 = vmul.f32 %v649, %v653
        %vm655 = vweird.f32 %v552
        %vm656 = vweird.f32 %v649
        %vm657 = vmor %vm655, %vm656
        %v658 = vsel %vm657, %v649, %v654
        %v659 = vrsqrt.pop %v553
        %v660 = vmul.f32 %v659, %v553
        %v661 = vmul.f32 %v660, %v659
        %v662 = vmul.f32 0.5, %v661
        %v663 = vsub.f32 1.5, %v662
        %v664 = vmul.f32 %v659, %v663
        %vm665 = vweird.f32 %v553
        %vm666 = vweird.f32 %v659
        %vm667 = vmor %vm665, %vm666
        %v668 = vsel %vm667, %v659, %v664
        %v669 = vrsqrt.pop %v554
        %v670 = vmul.f32 %v669, %v554
        %v671 = vmul.f32 %v670, %v669
        %v672 = vmul.f32 0.5, %v671
        %v673 = vsub.f32 1.5, %v672
        %v674 = vmul.f32 %v669, %v673
        %vm675 = vweird.f32 %v554
        %vm676 = vweird.f32 %v669
        %vm677 = vmor %vm675, %vm676
        %v678 = vsel %vm677, %v669, %v674
        %v679 = vrsqrt.pop %v555
        %v680 = vmul.f32 %v679, %v555
        %v681 = vmul.f32 %v680, %v679
        %v682 = vmul.f32 0.5, %v681
        %v683 = vsub.f32 1.5, %v682
        %v684 = vmul.f32 %v679, %v683
        %vm685 = vweird.f32 %v555
        %vm686 = vweird.f32 %v679
        %vm687 = vmor %vm685, %vm686
        %v688 = vsel %vm687, %v679, %v684
        %v689 = vrsqrt.pop %v556
        %v690 = vmul.f32 %v689, %v556
        %v691 = vmul.f32 %v690, %v689
        %v692 = vmul.f32 0.5, %v691
        %v693 = vsub.f32 1.5, %v692
        %v694 = vmul.f32 %v689, %v693
        %vm695 = vweird.f32 %v556
        %vm696 = vweird.f32 %v689
        %vm697 = vmor %vm695, %vm696
        %v698 = vsel %vm697, %v689, %v694
        %v699 = vrsqrt.pop %v557
        %v700 = vmul.f32 %v699, %v557
        %v701 = vmul.f32 %v700, %v699
        %v702 = vmul.f32 0.5, %v701
        %v703 = vsub.f32 1.5, %v702
        %v704 = vmul.f32 %v699, %v703
        %vm705 = vweird.f32 %v557
        %vm706 = vweird.f32 %v699
        %vm707 = vmor %vm705, %vm706
        %v708 = vsel %vm707, %v699, %v704
        %v709 = vrsqrt.pop %v558
        %v710 = vmul.f32 %v709, %v558
        %v711 = vmul.f32 %v710, %v709
        %v712 = vmul.f32 0.5, %v711
        %v713 = vsub.f32 1.5, %v712
        %v714 = vmul.f32 %v709, %v713
        %vm715 = vweird.f32 %v558
        %vm716 = vweird.f32 %v709
        %vm717 = vmor %vm715, %vm716
        %v718 = vsel %vm717, %v709, %v714
        %v719 = vmul.f32 %v415, %v568
        %v720 = vmul.f32 %v416, %v568
        %v721 = vmul.f32 %v417, %v578
        %v722 = vmul.f32 %v418, %v578
        %v723 = vmul.f32 %v419, %v588
        %v724 = vmul.f32 %v420, %v588
        %v725 = vmul.f32 %v421, %v598
        %v726 = vmul.f32 %v422, %v598
        %v727 = vmul.f32 %v423, %v608
        %v728 = vmul.f32 %v424, %v608
        %v729 = vmul.f32 %v425, %v618
        %v730 = vmul.f32 %v426, %v618
        %v731 = vmul.f32 %v427, %v628
        %v732 = vmul.f32 %v428, %v628
        %v733 = vmul.f32 %v429, %v638
        %v734 = vmul.f32 %v430, %v638
        %v735 = vmul.f32 %v431, %v648
        %v736 = vmul.f32 %v432, %v648
        %v737 = vmul.f32 %v433, %v658
        %v738 = vmul.f32 %v434, %v658
        %v739 = vmul.f32 %v435, %v668
        %v740 = vmul.f32 %v436, %v668
        %v741 = vmul.f32 %v437, %v678
        %v742 = vmul.f32 %v438, %v678
        %v743 = vmul.f32 %v439, %v688
        %v744 = vmul.f32 %v440, %v688
        %v745 = vmul.f32 %v441, %v698
        %v746 = vmul.f32 %v442, %v698
        %v747 = vmul.f32 %v443, %v708
        %v748 = vmul.f32 %v444, %v708
        %v749 = vmul.f32 %v445, %v718
        %v750 = vmul.f32 %v446, %v718
        %v752 = vperm.slane %v340, 0
        %v753 = vperm.slane %v340, 1
        %v756 = vmul.f32 %v752, %v719
        %v757 = vmul.f32 %v753, %v720
        %v758 = vmul.f32 %v752, %v721
        %v759 = vmul.f32 %v753, %v722
        %v760 = vmul.f32 %v752, %v723
        %v761 = vmul.f32 %v753, %v724
        %v762 = vmul.f32 %v752, %v725
        %v763 = vmul.f32 %v753, %v726
        %v764 = vmul.f32 %v752, %v727
        %v765 = vmul.f32 %v753, %v728
        %v766 = vmul.f32 %v752, %v729
        %v767 = vmul.f32 %v753, %v730
        %v768 = vmul.f32 %v752, %v731
        %v769 = vmul.f32 %v753, %v732
        %v770 = vmul.f32 %v752, %v733
        %v771 = vmul.f32 %v753, %v734
        %v772 = vmul.f32 %v752, %v735
        %v773 = vmul.f32 %v753, %v736
        %v774 = vmul.f32 %v752, %v737
        %v775 = vmul.f32 %v753, %v738
        %v776 = vmul.f32 %v752, %v739
        %v777 = vmul.f32 %v753, %v740
        %v778 = vmul.f32 %v752, %v741
        %v779 = vmul.f32 %v753, %v742
        %v780 = vmul.f32 %v752, %v743
        %v781 = vmul.f32 %v753, %v744
        %v782 = vmul.f32 %v752, %v745
        %v783 = vmul.f32 %v753, %v746
        %v784 = vmul.f32 %v752, %v747
        %v785 = vmul.f32 %v753, %v748
        %v786 = vmul.f32 %v752, %v749
        %v787 = vmul.f32 %v753, %v750
        %v789 = vperm.slane %v341, 0
        %v790 = vperm.slane %v341, 1
        %v793 = vadd.f32 %v756, %v789
        %v794 = vadd.f32 %v757, %v790
        %v795 = vadd.f32 %v758, %v789
        %v796 = vadd.f32 %v759, %v790
        %v797 = vadd.f32 %v760, %v789
        %v798 = vadd.f32 %v761, %v790
        %v799 = vadd.f32 %v762, %v789
        %v800 = vadd.f32 %v763, %v790
        %v801 = vadd.f32 %v764, %v789
        %v802 = vadd.f32 %v765, %v790
        %v803 = vadd.f32 %v766, %v789
        %v804 = vadd.f32 %v767, %v790
        %v805 = vadd.f32 %v768, %v789
        %v806 = vadd.f32 %v769, %v790
        %v807 = vadd.f32 %v770, %v789
        %v808 = vadd.f32 %v771, %v790
        %v809 = vadd.f32 %v772, %v789
        %v810 = vadd.f32 %v773, %v790
        %v811 = vadd.f32 %v774, %v789
        %v812 = vadd.f32 %v775, %v790
        %v813 = vadd.f32 %v776, %v789
        %v814 = vadd.f32 %v777, %v790
        %v815 = vadd.f32 %v778, %v789
        %v816 = vadd.f32 %v779, %v790
        %v817 = vadd.f32 %v780, %v789
        %v818 = vadd.f32 %v781, %v790
        %v819 = vadd.f32 %v782, %v789
        %v820 = vadd.f32 %v783, %v790
        %v821 = vadd.f32 %v784, %v789
        %v822 = vadd.f32 %v785, %v790
        %v823 = vadd.f32 %v786, %v789
        %v824 = vadd.f32 %v787, %v790
        %v825 = vpack.c.bf16 %v795, %v793
        %v826 = vpack.c.bf16 %v796, %v794
        %v827 = vpack.c.bf16 %v799, %v797
        %v828 = vpack.c.bf16 %v800, %v798
        %v829 = vpack.c.bf16 %v803, %v801
        %v830 = vpack.c.bf16 %v804, %v802
        %v831 = vpack.c.bf16 %v807, %v805
        %v832 = vpack.c.bf16 %v808, %v806
        %v833 = vpack.c.bf16 %v811, %v809
        %v834 = vpack.c.bf16 %v812, %v810
        %v835 = vpack.c.bf16 %v815, %v813
        %v836 = vpack.c.bf16 %v816, %v814
        %v837 = vpack.c.bf16 %v819, %v817
        %v838 = vpack.c.bf16 %v820, %v818
        %v839 = vpack.c.bf16 %v823, %v821
        %v840 = vpack.c.bf16 %v824, %v822
        %v841 = vld [vmem:[#allocation5] sm:$0xff]
        %v842 = vld [vmem:[#allocation5 + $0x8] sm:$0xff]
        %v843 = vld [vmem:[#allocation5 + $0x10] sm:$0xff]
        %v844 = vld [vmem:[#allocation5 + $0x18] sm:$0xff]
        %v845 = vld [vmem:[#allocation5 + $0x20] sm:$0xff]
        %v846 = vld [vmem:[#allocation5 + $0x28] sm:$0xff]
        %v847 = vld [vmem:[#allocation5 + $0x30] sm:$0xff]
        %v848 = vld [vmem:[#allocation5 + $0x38] sm:$0xff]
        %v849 = vld [vmem:[#allocation5 + $0x40] sm:$0xff]
        %v850 = vld [vmem:[#allocation5 + $0x48] sm:$0xff]
        %v851 = vld [vmem:[#allocation5 + $0x50] sm:$0xff]
        %v852 = vld [vmem:[#allocation5 + $0x58] sm:$0xff]
        %v853 = vld [vmem:[#allocation5 + $0x60] sm:$0xff]
        %v854 = vld [vmem:[#allocation5 + $0x68] sm:$0xff]
        %v855 = vld [vmem:[#allocation5 + $0x70] sm:$0xff]
        %v856 = vld [vmem:[#allocation5 + $0x78] sm:$0xff]
        %v857 = vld [vmem:[#allocation5 + $0x80] sm:$0xff]
        %v858 = vld [vmem:[#allocation5 + $0x88] sm:$0xff]
        %v859 = vld [vmem:[#allocation5 + $0x90] sm:$0xff]
        %v860 = vld [vmem:[#allocation5 + $0x98] sm:$0xff]
        %v861 = vld [vmem:[#allocation5 + $0xa0] sm:$0xff]
        %v862 = vld [vmem:[#allocation5 + $0xa8] sm:$0xff]
        %v863 = vld [vmem:[#allocation5 + $0xb0] sm:$0xff]
        %v864 = vld [vmem:[#allocation5 + $0xb8] sm:$0xff]
        %v865 = vld [vmem:[#allocation5 + $0xc0] sm:$0xff]
        %v866 = vld [vmem:[#allocation5 + $0xc8] sm:$0xff]
        %v867 = vld [vmem:[#allocation5 + $0xd0] sm:$0xff]
        %v868 = vld [vmem:[#allocation5 + $0xd8] sm:$0xff]
        %v869 = vld [vmem:[#allocation5 + $0xe0] sm:$0xff]
        %v870 = vld [vmem:[#allocation5 + $0xe8] sm:$0xff]
        %v871 = vld [vmem:[#allocation5 + $0xf0] sm:$0xff]
        %v872 = vld [vmem:[#allocation5 + $0xf8] sm:$0xff]
        %v873 = vld [vmem:[#allocation5 + $0x100] sm:$0xff]
        %v874 = vld [vmem:[#allocation5 + $0x108] sm:$0xff]
        %v875 = vld [vmem:[#allocation5 + $0x110] sm:$0xff]
        %v876 = vld [vmem:[#allocation5 + $0x118] sm:$0xff]
        %v877 = vld [vmem:[#allocation5 + $0x120] sm:$0xff]
        %v878 = vld [vmem:[#allocation5 + $0x128] sm:$0xff]
        %v879 = vld [vmem:[#allocation5 + $0x130] sm:$0xff]
        %v880 = vld [vmem:[#allocation5 + $0x138] sm:$0xff]
        %v881 = vld [vmem:[#allocation5 + $0x140] sm:$0xff]
        %v882 = vld [vmem:[#allocation5 + $0x148] sm:$0xff]
        %v883 = vld [vmem:[#allocation5 + $0x150] sm:$0xff]
        %v884 = vld [vmem:[#allocation5 + $0x158] sm:$0xff]
        %v885 = vld [vmem:[#allocation5 + $0x160] sm:$0xff]
        %v886 = vld [vmem:[#allocation5 + $0x168] sm:$0xff]
        %v887 = vld [vmem:[#allocation5 + $0x170] sm:$0xff]
        %v888 = vld [vmem:[#allocation5 + $0x178] sm:$0xff]
        %v889 = vld [vmem:[#allocation5 + $0x180] sm:$0xff]
        %v890 = vld [vmem:[#allocation5 + $0x188] sm:$0xff]
        %v891 = vld [vmem:[#allocation5 + $0x190] sm:$0xff]
        %v892 = vld [vmem:[#allocation5 + $0x198] sm:$0xff]
        %v893 = vld [vmem:[#allocation5 + $0x1a0] sm:$0xff]
        %v894 = vld [vmem:[#allocation5 + $0x1a8] sm:$0xff]
        %v895 = vld [vmem:[#allocation5 + $0x1b0] sm:$0xff]
        %v896 = vld [vmem:[#allocation5 + $0x1b8] sm:$0xff]
        %v897 = vld [vmem:[#allocation5 + $0x1c0] sm:$0xff]
        %v898 = vld [vmem:[#allocation5 + $0x1c8] sm:$0xff]
        %v899 = vld [vmem:[#allocation5 + $0x1d0] sm:$0xff]
        %v900 = vld [vmem:[#allocation5 + $0x1d8] sm:$0xff]
        %v901 = vld [vmem:[#allocation5 + $0x1e0] sm:$0xff]
        %v902 = vld [vmem:[#allocation5 + $0x1e8] sm:$0xff]
        %v903 = vld [vmem:[#allocation5 + $0x1f0] sm:$0xff]
        %v904 = vld [vmem:[#allocation5 + $0x1f8] sm:$0xff]
        %v905 = vld [vmem:[%s3] sm:$0xf]
        %v907 = vperm.slane %v905, 0
        %v908 = vperm.slane %v905, 1
        %v909 = vperm.slane %v905, 2
        %v910 = vperm.slane %v905, 3
        %v979 = vunpack.c.l.b16 %v841
        %v980 = vunpack.c.h.b16 %v841
        %v981 = vunpack.c.l.b16 %v842
        %v982 = vunpack.c.h.b16 %v842
        %v983 = vunpack.c.l.b16 %v843
        %v984 = vunpack.c.h.b16 %v843
        %v985 = vunpack.c.l.b16 %v844
        %v986 = vunpack.c.h.b16 %v844
        %v987 = vunpack.c.l.b16 %v845
        %v988 = vunpack.c.h.b16 %v845
        %v989 = vunpack.c.l.b16 %v846
        %v990 = vunpack.c.h.b16 %v846
        %v991 = vunpack.c.l.b16 %v847
        %v992 = vunpack.c.h.b16 %v847
        %v993 = vunpack.c.l.b16 %v848
        %v994 = vunpack.c.h.b16 %v848
        %v995 = vunpack.c.l.b16 %v849
        %v996 = vunpack.c.h.b16 %v849
        %v997 = vunpack.c.l.b16 %v850
        %v998 = vunpack.c.h.b16 %v850
        %v999 = vunpack.c.l.b16 %v851
        %v1000 = vunpack.c.h.b16 %v851
        %v1001 = vunpack.c.l.b16 %v852
        %v1002 = vunpack.c.h.b16 %v852
        %v1003 = vunpack.c.l.b16 %v853
        %v1004 = vunpack.c.h.b16 %v853
        %v1005 = vunpack.c.l.b16 %v854
        %v1006 = vunpack.c.h.b16 %v854
        %v1007 = vunpack.c.l.b16 %v855
        %v1008 = vunpack.c.h.b16 %v855
        %v1009 = vunpack.c.l.b16 %v856
        %v1010 = vunpack.c.h.b16 %v856
        %v1011 = vunpack.c.l.b16 %v857
        %v1012 = vunpack.c.h.b16 %v857
        %v1013 = vunpack.c.l.b16 %v858
        %v1014 = vunpack.c.h.b16 %v858
        %v1015 = vunpack.c.l.b16 %v859
        %v1016 = vunpack.c.h.b16 %v859
        %v1017 = vunpack.c.l.b16 %v860
        %v1018 = vunpack.c.h.b16 %v860
        %v1019 = vunpack.c.l.b16 %v861
        %v1020 = vunpack.c.h.b16 %v861
        %v1021 = vunpack.c.l.b16 %v862
        %v1022 = vunpack.c.h.b16 %v862
        %v1023 = vunpack.c.l.b16 %v863
        %v1024 = vunpack.c.h.b16 %v863
        %v1025 = vunpack.c.l.b16 %v864
        %v1026 = vunpack.c.h.b16 %v864
        %v1027 = vunpack.c.l.b16 %v865
        %v1028 = vunpack.c.h.b16 %v865
        %v1029 = vunpack.c.l.b16 %v866
        %v1030 = vunpack.c.h.b16 %v866
        %v1031 = vunpack.c.l.b16 %v867
        %v1032 = vunpack.c.h.b16 %v867
        %v1033 = vunpack.c.l.b16 %v868
        %v1034 = vunpack.c.h.b16 %v868
        %v1035 = vunpack.c.l.b16 %v869
        %v1036 = vunpack.c.h.b16 %v869
        %v1037 = vunpack.c.l.b16 %v870
        %v1038 = vunpack.c.h.b16 %v870
        %v1039 = vunpack.c.l.b16 %v871
        %v1040 = vunpack.c.h.b16 %v871
        %v1041 = vunpack.c.l.b16 %v872
        %v1042 = vunpack.c.h.b16 %v872
        %v1043 = vunpack.c.l.b16 %v873
        %v1044 = vunpack.c.h.b16 %v873
        %v1045 = vunpack.c.l.b16 %v874
        %v1046 = vunpack.c.h.b16 %v874
        %v1047 = vunpack.c.l.b16 %v875
        %v1048 = vunpack.c.h.b16 %v875
        %v1049 = vunpack.c.l.b16 %v876
        %v1050 = vunpack.c.h.b16 %v876
        %v1051 = vunpack.c.l.b16 %v877
        %v1052 = vunpack.c.h.b16 %v877
        %v1053 = vunpack.c.l.b16 %v878
        %v1054 = vunpack.c.h.b16 %v878
        %v1055 = vunpack.c.l.b16 %v879
        %v1056 = vunpack.c.h.b16 %v879
        %v1057 = vunpack.c.l.b16 %v880
        %v1058 = vunpack.c.h.b16 %v880
        %v1059 = vunpack.c.l.b16 %v881
        %v1060 = vunpack.c.h.b16 %v881
        %v1061 = vunpack.c.l.b16 %v882
        %v1062 = vunpack.c.h.b16 %v882
        %v1063 = vunpack.c.l.b16 %v883
        %v1064 = vunpack.c.h.b16 %v883
        %v1065 = vunpack.c.l.b16 %v884
        %v1066 = vunpack.c.h.b16 %v884
        %v1067 = vunpack.c.l.b16 %v885
        %v1068 = vunpack.c.h.b16 %v885
        %v1069 = vunpack.c.l.b16 %v886
        %v1070 = vunpack.c.h.b16 %v886
        %v1071 = vunpack.c.l.b16 %v887
        %v1072 = vunpack.c.h.b16 %v887
        %v1073 = vunpack.c.l.b16 %v888
        %v1074 = vunpack.c.h.b16 %v888
        %v1075 = vunpack.c.l.b16 %v889
        %v1076 = vunpack.c.h.b16 %v889
        %v1077 = vunpack.c.l.b16 %v890
        %v1078 = vunpack.c.h.b16 %v890
        %v1079 = vunpack.c.l.b16 %v891
        %v1080 = vunpack.c.h.b16 %v891
        %v1081 = vunpack.c.l.b16 %v892
        %v1082 = vunpack.c.h.b16 %v892
        %v1083 = vunpack.c.l.b16 %v893
        %v1084 = vunpack.c.h.b16 %v893
        %v1085 = vunpack.c.l.b16 %v894
        %v1086 = vunpack.c.h.b16 %v894
        %v1087 = vunpack.c.l.b16 %v895
        %v1088 = vunpack.c.h.b16 %v895
        %v1089 = vunpack.c.l.b16 %v896
        %v1090 = vunpack.c.h.b16 %v896
        %v1091 = vunpack.c.l.b16 %v897
        %v1092 = vunpack.c.h.b16 %v897
        %v1093 = vunpack.c.l.b16 %v898
        %v1094 = vunpack.c.h.b16 %v898
        %v1095 = vunpack.c.l.b16 %v899
        %v1096 = vunpack.c.h.b16 %v899
        %v1097 = vunpack.c.l.b16 %v900
        %v1098 = vunpack.c.h.b16 %v900
        %v1099 = vunpack.c.l.b16 %v901
        %v1100 = vunpack.c.h.b16 %v901
        %v1101 = vunpack.c.l.b16 %v902
        %v1102 = vunpack.c.h.b16 %v902
        %v1103 = vunpack.c.l.b16 %v903
        %v1104 = vunpack.c.h.b16 %v903
        %v1105 = vunpack.c.l.b16 %v904
        %v1106 = vunpack.c.h.b16 %v904
        %v1107 = vpack.c.b16 %v983, %v979
        %v1108 = vpack.c.b16 %v984, %v980
        %v1109 = vpack.c.b16 %v985, %v981
        %v1110 = vpack.c.b16 %v986, %v982
        %v1111 = vpack.c.b16 %v991, %v987
        %v1112 = vpack.c.b16 %v992, %v988
        %v1113 = vpack.c.b16 %v993, %v989
        %v1114 = vpack.c.b16 %v994, %v990
        %v1115 = vpack.c.b16 %v999, %v995
        %v1116 = vpack.c.b16 %v1000, %v996
        %v1117 = vpack.c.b16 %v1001, %v997
        %v1118 = vpack.c.b16 %v1002, %v998
        %v1119 = vpack.c.b16 %v1007, %v1003
        %v1120 = vpack.c.b16 %v1008, %v1004
        %v1121 = vpack.c.b16 %v1009, %v1005
        %v1122 = vpack.c.b16 %v1010, %v1006
        %v1123 = vpack.c.b16 %v1015, %v1011
        %v1124 = vpack.c.b16 %v1016, %v1012
        %v1125 = vpack.c.b16 %v1017, %v1013
        %v1126 = vpack.c.b16 %v1018, %v1014
        %v1127 = vpack.c.b16 %v1023, %v1019
        %v1128 = vpack.c.b16 %v1024, %v1020
        %v1129 = vpack.c.b16 %v1025, %v1021
        %v1130 = vpack.c.b16 %v1026, %v1022
        %v1131 = vpack.c.b16 %v1031, %v1027
        %v1132 = vpack.c.b16 %v1032, %v1028
        %v1133 = vpack.c.b16 %v1033, %v1029
        %v1134 = vpack.c.b16 %v1034, %v1030
        %v1135 = vpack.c.b16 %v1039, %v1035
        %v1136 = vpack.c.b16 %v1040, %v1036
        %v1137 = vpack.c.b16 %v1041, %v1037
        %v1138 = vpack.c.b16 %v1042, %v1038
        %v1139 = vpack.c.b16 %v1047, %v1043
        %v1140 = vpack.c.b16 %v1048, %v1044
        %v1141 = vpack.c.b16 %v1049, %v1045
        %v1142 = vpack.c.b16 %v1050, %v1046
        %v1143 = vpack.c.b16 %v1055, %v1051
        %v1144 = vpack.c.b16 %v1056, %v1052
        %v1145 = vpack.c.b16 %v1057, %v1053
        %v1146 = vpack.c.b16 %v1058, %v1054
        %v1147 = vpack.c.b16 %v1063, %v1059
        %v1148 = vpack.c.b16 %v1064, %v1060
        %v1149 = vpack.c.b16 %v1065, %v1061
        %v1150 = vpack.c.b16 %v1066, %v1062
        %v1151 = vpack.c.b16 %v1071, %v1067
        %v1152 = vpack.c.b16 %v1072, %v1068
        %v1153 = vpack.c.b16 %v1073, %v1069
        %v1154 = vpack.c.b16 %v1074, %v1070
        %v1155 = vpack.c.b16 %v1079, %v1075
        %v1156 = vpack.c.b16 %v1080, %v1076
        %v1157 = vpack.c.b16 %v1081, %v1077
        %v1158 = vpack.c.b16 %v1082, %v1078
        %v1159 = vpack.c.b16 %v1087, %v1083
        %v1160 = vpack.c.b16 %v1088, %v1084
        %v1161 = vpack.c.b16 %v1089, %v1085
        %v1162 = vpack.c.b16 %v1090, %v1086
        %v1163 = vpack.c.b16 %v1095, %v1091
        %v1164 = vpack.c.b16 %v1096, %v1092
        %v1165 = vpack.c.b16 %v1097, %v1093
        %v1166 = vpack.c.b16 %v1098, %v1094
        %v1167 = vpack.c.b16 %v1103, %v1099
        %v1168 = vpack.c.b16 %v1104, %v1100
        %v1169 = vpack.c.b16 %v1105, %v1101
        %v1170 = vpack.c.b16 %v1106, %v1102
        %1235 = vmatpush.bf16.msra.mxu0 %v1135
        %1236 = vmatpush.bf16.msra.mxu0 %v1131
        %1237 = vmatpush.bf16.msra.mxu0 %v1127
        %1238 = vmatpush.bf16.msra.mxu0 %v1123
        %1239 = vmatpush.bf16.msra.mxu0 %v1119
        %1240 = vmatpush.bf16.msra.mxu0 %v1115
        %1241 = vmatpush.bf16.msra.mxu0 %v1111
        %1242 = vmatpush.bf16.msra.mxu0 %v1107
        %1243 = vmatmul.bf16.gmra.mxu0 %v825
        %v1244 = vpop.f32.mrf.mxu0
        %v1245 = vadd.f32 %v907, %v1244
        %v1246 = vpop.f32.mrf.mxu0
        %v1247 = vadd.f32 %v907, %v1246
        %1248 = vmatmul.bf16.gmra.mxu0 %v827
        %v1249 = vpop.f32.mrf.mxu0
        %v1250 = vadd.f32 %v907, %v1249
        %v1251 = vpop.f32.mrf.mxu0
        %v1252 = vadd.f32 %v907, %v1251
        %1253 = vmatmul.bf16.gmra.mxu0 %v829
        %v1254 = vpop.f32.mrf.mxu0
        %v1255 = vadd.f32 %v907, %v1254
        %v1256 = vpop.f32.mrf.mxu0
        %v1257 = vadd.f32 %v907, %v1256
        %1258 = vmatmul.bf16.gmra.mxu0 %v831
        %v1259 = vpop.f32.mrf.mxu0
        %v1260 = vadd.f32 %v907, %v1259
        %v1261 = vpop.f32.mrf.mxu0
        %v1262 = vadd.f32 %v907, %v1261
        %1263 = vmatmul.bf16.gmra.mxu0 %v833
        %v1264 = vpop.f32.mrf.mxu0
        %v1265 = vadd.f32 %v907, %v1264
        %v1266 = vpop.f32.mrf.mxu0
        %v1267 = vadd.f32 %v907, %v1266
        %1268 = vmatmul.bf16.gmra.mxu0 %v835
        %v1269 = vpop.f32.mrf.mxu0
        %v1270 = vadd.f32 %v907, %v1269
        %v1271 = vpop.f32.mrf.mxu0
        %v1272 = vadd.f32 %v907, %v1271
        %1273 = vmatmul.bf16.gmra.mxu0 %v837
        %v1274 = vpop.f32.mrf.mxu0
        %v1275 = vadd.f32 %v907, %v1274
        %v1276 = vpop.f32.mrf.mxu0
        %v1277 = vadd.f32 %v907, %v1276
        %1278 = vmatmul.bf16.gmra.mxu0 %v839
        %v1279 = vpop.f32.mrf.mxu0
        %v1280 = vadd.f32 %v907, %v1279
        %v1281 = vpop.f32.mrf.mxu0
        %v1282 = vadd.f32 %v907, %v1281
        %1283 = vdwg.mxu0
        %1284 = vmatpush.bf16.msra.mxu0 %v1167
        %1285 = vmatpush.bf16.msra.mxu0 %v1163
        %1286 = vmatpush.bf16.msra.mxu0 %v1159
        %1287 = vmatpush.bf16.msra.mxu0 %v1155
        %1288 = vmatpush.bf16.msra.mxu0 %v1151
        %1289 = vmatpush.bf16.msra.mxu0 %v1147
        %1290 = vmatpush.bf16.msra.mxu0 %v1143
        %1291 = vmatpush.bf16.msra.mxu0 %v1139
        %1292 = vmatmul.bf16.gmra.mxu0 %v826
        %v1293 = vpop.f32.mrf.mxu0
        %v1294 = vadd.f32 %v1245, %v1293
        %v1295 = vpop.f32.mrf.mxu0
        %v1296 = vadd.f32 %v1247, %v1295
        %1297 = vmatmul.bf16.gmra.mxu0 %v828
        %v1298 = vpop.f32.mrf.mxu0
        %v1299 = vadd.f32 %v1250, %v1298
        %v1300 = vpop.f32.mrf.mxu0
        %v1301 = vadd.f32 %v1252, %v1300
        %1302 = vmatmul.bf16.gmra.mxu0 %v830
        %v1303 = vpop.f32.mrf.mxu0
        %v1304 = vadd.f32 %v1255, %v1303
        %v1305 = vpop.f32.mrf.mxu0
        %v1306 = vadd.f32 %v1257, %v1305
        %1307 = vmatmul.bf16.gmra.mxu0 %v832
        %v1308 = vpop.f32.mrf.mxu0
        %v1309 = vadd.f32 %v1260, %v1308
        %v1310 = vpop.f32.mrf.mxu0
        %v1311 = vadd.f32 %v1262, %v1310
        %1312 = vmatmul.bf16.gmra.mxu0 %v834
        %v1313 = vpop.f32.mrf.mxu0
        %v1314 = vadd.f32 %v1265, %v1313
        %v1315 = vpop.f32.mrf.mxu0
        %v1316 = vadd.f32 %v1267, %v1315
        %1317 = vmatmul.bf16.gmra.mxu0 %v836
        %v1318 = vpop.f32.mrf.mxu0
        %v1319 = vadd.f32 %v1270, %v1318
        %v1320 = vpop.f32.mrf.mxu0
        %v1321 = vadd.f32 %v1272, %v1320
        %1322 = vmatmul.bf16.gmra.mxu0 %v838
        %v1323 = vpop.f32.mrf.mxu0
        %v1324 = vadd.f32 %v1275, %v1323
        %v1325 = vpop.f32.mrf.mxu0
        %v1326 = vadd.f32 %v1277, %v1325
        %1327 = vmatmul.bf16.gmra.mxu0 %v840
        %v1328 = vpop.f32.mrf.mxu0
        %v1329 = vadd.f32 %v1280, %v1328
        %v1330 = vpop.f32.mrf.mxu0
        %v1331 = vadd.f32 %v1282, %v1330
        %1332 = vdwg.mxu0
        %1333 = vmatpush.bf16.msra.mxu0 %v1136
        %1334 = vmatpush.bf16.msra.mxu0 %v1132
        %1335 = vmatpush.bf16.msra.mxu0 %v1128
        %1336 = vmatpush.bf16.msra.mxu0 %v1124
        %1337 = vmatpush.bf16.msra.mxu0 %v1120
        %1338 = vmatpush.bf16.msra.mxu0 %v1116
        %1339 = vmatpush.bf16.msra.mxu0 %v1112
        %1340 = vmatpush.bf16.msra.mxu0 %v1108
        %1341 = vmatmul.bf16.gmra.mxu0 %v825
        %v1342 = vpop.f32.mrf.mxu0
        %v1343 = vadd.f32 %v908, %v1342
        %v1344 = vpop.f32.mrf.mxu0
        %v1345 = vadd.f32 %v908, %v1344
        %1346 = vmatmul.bf16.gmra.mxu0 %v827
        %v1347 = vpop.f32.mrf.mxu0
        %v1348 = vadd.f32 %v908, %v1347
        %v1349 = vpop.f32.mrf.mxu0
        %v1350 = vadd.f32 %v908, %v1349
        %1351 = vmatmul.bf16.gmra.mxu0 %v829
        %v1352 = vpop.f32.mrf.mxu0
        %v1353 = vadd.f32 %v908, %v1352
        %v1354 = vpop.f32.mrf.mxu0
        %v1355 = vadd.f32 %v908, %v1354
        %1356 = vmatmul.bf16.gmra.mxu0 %v831
        %v1357 = vpop.f32.mrf.mxu0
        %v1358 = vadd.f32 %v908, %v1357
        %v1359 = vpop.f32.mrf.mxu0
        %v1360 = vadd.f32 %v908, %v1359
        %1361 = vmatmul.bf16.gmra.mxu0 %v833
        %v1362 = vpop.f32.mrf.mxu0
        %v1363 = vadd.f32 %v908, %v1362
        %v1364 = vpop.f32.mrf.mxu0
        %v1365 = vadd.f32 %v908, %v1364
        %1366 = vmatmul.bf16.gmra.mxu0 %v835
        %v1367 = vpop.f32.mrf.mxu0
        %v1368 = vadd.f32 %v908, %v1367
        %v1369 = vpop.f32.mrf.mxu0
        %v1370 = vadd.f32 %v908, %v1369
        %1371 = vmatmul.bf16.gmra.mxu0 %v837
        %v1372 = vpop.f32.mrf.mxu0
        %v1373 = vadd.f32 %v908, %v1372
        %v1374 = vpop.f32.mrf.mxu0
        %v1375 = vadd.f32 %v908, %v1374
        %1376 = vmatmul.bf16.gmra.mxu0 %v839
        %v1377 = vpop.f32.mrf.mxu0
        %v1378 = vadd.f32 %v908, %v1377
        %v1379 = vpop.f32.mrf.mxu0
        %v1380 = vadd.f32 %v908, %v1379
        %1381 = vdwg.mxu0
        %1382 = vmatpush.bf16.msra.mxu0 %v1168
        %1383 = vmatpush.bf16.msra.mxu0 %v1164
        %1384 = vmatpush.bf16.msra.mxu0 %v1160
        %1385 = vmatpush.bf16.msra.mxu0 %v1156
        %1386 = vmatpush.bf16.msra.mxu0 %v1152
        %1387 = vmatpush.bf16.msra.mxu0 %v1148
        %1388 = vmatpush.bf16.msra.mxu0 %v1144
        %1389 = vmatpush.bf16.msra.mxu0 %v1140
        %1390 = vmatmul.bf16.gmra.mxu0 %v826
        %v1391 = vpop.f32.mrf.mxu0
        %v1392 = vadd.f32 %v1343, %v1391
        %v1393 = vpop.f32.mrf.mxu0
        %v1394 = vadd.f32 %v1345, %v1393
        %1395 = vmatmul.bf16.gmra.mxu0 %v828
        %v1396 = vpop.f32.mrf.mxu0
        %v1397 = vadd.f32 %v1348, %v1396
        %v1398 = vpop.f32.mrf.mxu0
        %v1399 = vadd.f32 %v1350, %v1398
        %1400 = vmatmul.bf16.gmra.mxu0 %v830
        %v1401 = vpop.f32.mrf.mxu0
        %v1402 = vadd.f32 %v1353, %v1401
        %v1403 = vpop.f32.mrf.mxu0
        %v1404 = vadd.f32 %v1355, %v1403
        %1405 = vmatmul.bf16.gmra.mxu0 %v832
        %v1406 = vpop.f32.mrf.mxu0
        %v1407 = vadd.f32 %v1358, %v1406
        %v1408 = vpop.f32.mrf.mxu0
        %v1409 = vadd.f32 %v1360, %v1408
        %1410 = vmatmul.bf16.gmra.mxu0 %v834
        %v1411 = vpop.f32.mrf.mxu0
        %v1412 = vadd.f32 %v1363, %v1411
        %v1413 = vpop.f32.mrf.mxu0
        %v1414 = vadd.f32 %v1365, %v1413
        %1415 = vmatmul.bf16.gmra.mxu0 %v836
        %v1416 = vpop.f32.mrf.mxu0
        %v1417 = vadd.f32 %v1368, %v1416
        %v1418 = vpop.f32.mrf.mxu0
        %v1419 = vadd.f32 %v1370, %v1418
        %1420 = vmatmul.bf16.gmra.mxu0 %v838
        %v1421 = vpop.f32.mrf.mxu0
        %v1422 = vadd.f32 %v1373, %v1421
        %v1423 = vpop.f32.mrf.mxu0
        %v1424 = vadd.f32 %v1375, %v1423
        %1425 = vmatmul.bf16.gmra.mxu0 %v840
        %v1426 = vpop.f32.mrf.mxu0
        %v1427 = vadd.f32 %v1378, %v1426
        %v1428 = vpop.f32.mrf.mxu0
        %v1429 = vadd.f32 %v1380, %v1428
        %1430 = vdwg.mxu0
        %1431 = vmatpush.bf16.msra.mxu0 %v1137
        %1432 = vmatpush.bf16.msra.mxu0 %v1133
        %1433 = vmatpush.bf16.msra.mxu0 %v1129
        %1434 = vmatpush.bf16.msra.mxu0 %v1125
        %1435 = vmatpush.bf16.msra.mxu0 %v1121
        %1436 = vmatpush.bf16.msra.mxu0 %v1117
        %1437 = vmatpush.bf16.msra.mxu0 %v1113
        %1438 = vmatpush.bf16.msra.mxu0 %v1109
        %1439 = vmatmul.bf16.gmra.mxu0 %v825
        %v1440 = vpop.f32.mrf.mxu0
        %v1441 = vadd.f32 %v909, %v1440
        %v1442 = vpop.f32.mrf.mxu0
        %v1443 = vadd.f32 %v909, %v1442
        %1444 = vmatmul.bf16.gmra.mxu0 %v827
        %v1445 = vpop.f32.mrf.mxu0
        %v1446 = vadd.f32 %v909, %v1445
        %v1447 = vpop.f32.mrf.mxu0
        %v1448 = vadd.f32 %v909, %v1447
        %1449 = vmatmul.bf16.gmra.mxu0 %v829
        %v1450 = vpop.f32.mrf.mxu0
        %v1451 = vadd.f32 %v909, %v1450
        %v1452 = vpop.f32.mrf.mxu0
        %v1453 = vadd.f32 %v909, %v1452
        %1454 = vmatmul.bf16.gmra.mxu0 %v831
        %v1455 = vpop.f32.mrf.mxu0
        %v1456 = vadd.f32 %v909, %v1455
        %v1457 = vpop.f32.mrf.mxu0
        %v1458 = vadd.f32 %v909, %v1457
        %1459 = vmatmul.bf16.gmra.mxu0 %v833
        %v1460 = vpop.f32.mrf.mxu0
        %v1461 = vadd.f32 %v909, %v1460
        %v1462 = vpop.f32.mrf.mxu0
        %v1463 = vadd.f32 %v909, %v1462
        %1464 = vmatmul.bf16.gmra.mxu0 %v835
        %v1465 = vpop.f32.mrf.mxu0
        %v1466 = vadd.f32 %v909, %v1465
        %v1467 = vpop.f32.mrf.mxu0
        %v1468 = vadd.f32 %v909, %v1467
        %1469 = vmatmul.bf16.gmra.mxu0 %v837
        %v1470 = vpop.f32.mrf.mxu0
        %v1471 = vadd.f32 %v909, %v1470
        %v1472 = vpop.f32.mrf.mxu0
        %v1473 = vadd.f32 %v909, %v1472
        %1474 = vmatmul.bf16.gmra.mxu0 %v839
        %v1475 = vpop.f32.mrf.mxu0
        %v1476 = vadd.f32 %v909, %v1475
        %v1477 = vpop.f32.mrf.mxu0
        %v1478 = vadd.f32 %v909, %v1477
        %1479 = vdwg.mxu0
        %1480 = vmatpush.bf16.msra.mxu0 %v1169
        %1481 = vmatpush.bf16.msra.mxu0 %v1165
        %1482 = vmatpush.bf16.msra.mxu0 %v1161
        %1483 = vmatpush.bf16.msra.mxu0 %v1157
        %1484 = vmatpush.bf16.msra.mxu0 %v1153
        %1485 = vmatpush.bf16.msra.mxu0 %v1149
        %1486 = vmatpush.bf16.msra.mxu0 %v1145
        %1487 = vmatpush.bf16.msra.mxu0 %v1141
        %1488 = vmatmul.bf16.gmra.mxu0 %v826
        %v1489 = vpop.f32.mrf.mxu0
        %v1490 = vadd.f32 %v1441, %v1489
        %v1491 = vpop.f32.mrf.mxu0
        %v1492 = vadd.f32 %v1443, %v1491
        %1493 = vmatmul.bf16.gmra.mxu0 %v828
        %v1494 = vpop.f32.mrf.mxu0
        %v1495 = vadd.f32 %v1446, %v1494
        %v1496 = vpop.f32.mrf.mxu0
        %v1497 = vadd.f32 %v1448, %v1496
        %1498 = vmatmul.bf16.gmra.mxu0 %v830
        %v1499 = vpop.f32.mrf.mxu0
        %v1500 = vadd.f32 %v1451, %v1499
        %v1501 = vpop.f32.mrf.mxu0
        %v1502 = vadd.f32 %v1453, %v1501
        %1503 = vmatmul.bf16.gmra.mxu0 %v832
        %v1504 = vpop.f32.mrf.mxu0
        %v1505 = vadd.f32 %v1456, %v1504
        %v1506 = vpop.f32.mrf.mxu0
        %v1507 = vadd.f32 %v1458, %v1506
        %1508 = vmatmul.bf16.gmra.mxu0 %v834
        %v1509 = vpop.f32.mrf.mxu0
        %v1510 = vadd.f32 %v1461, %v1509
        %v1511 = vpop.f32.mrf.mxu0
        %v1512 = vadd.f32 %v1463, %v1511
        %1513 = vmatmul.bf16.gmra.mxu0 %v836
        %v1514 = vpop.f32.mrf.mxu0
        %v1515 = vadd.f32 %v1466, %v1514
        %v1516 = vpop.f32.mrf.mxu0
        %v1517 = vadd.f32 %v1468, %v1516
        %1518 = vmatmul.bf16.gmra.mxu0 %v838
        %v1519 = vpop.f32.mrf.mxu0
        %v1520 = vadd.f32 %v1471, %v1519
        %v1521 = vpop.f32.mrf.mxu0
        %v1522 = vadd.f32 %v1473, %v1521
        %1523 = vmatmul.bf16.gmra.mxu0 %v840
        %v1524 = vpop.f32.mrf.mxu0
        %v1525 = vadd.f32 %v1476, %v1524
        %v1526 = vpop.f32.mrf.mxu0
        %v1527 = vadd.f32 %v1478, %v1526
        %1528 = vdwg.mxu0
        %1529 = vmatpush.bf16.msra.mxu0 %v1138
        %1530 = vmatpush.bf16.msra.mxu0 %v1134
        %1531 = vmatpush.bf16.msra.mxu0 %v1130
        %1532 = vmatpush.bf16.msra.mxu0 %v1126
        %1533 = vmatpush.bf16.msra.mxu0 %v1122
        %1534 = vmatpush.bf16.msra.mxu0 %v1118
        %1535 = vmatpush.bf16.msra.mxu0 %v1114
        %1536 = vmatpush.bf16.msra.mxu0 %v1110
        %1537 = vmatmul.bf16.gmra.mxu0 %v825
        %v1538 = vpop.f32.mrf.mxu0
        %v1539 = vadd.f32 %v910, %v1538
        %v1540 = vpop.f32.mrf.mxu0
        %v1541 = vadd.f32 %v910, %v1540
        %1542 = vmatmul.bf16.gmra.mxu0 %v827
        %v1543 = vpop.f32.mrf.mxu0
        %v1544 = vadd.f32 %v910, %v1543
        %v1545 = vpop.f32.mrf.mxu0
        %v1546 = vadd.f32 %v910, %v1545
        %1547 = vmatmul.bf16.gmra.mxu0 %v829
        %v1548 = vpop.f32.mrf.mxu0
        %v1549 = vadd.f32 %v910, %v1548
        %v1550 = vpop.f32.mrf.mxu0
        %v1551 = vadd.f32 %v910, %v1550
        %1552 = vmatmul.bf16.gmra.mxu0 %v831
        %v1553 = vpop.f32.mrf.mxu0
        %v1554 = vadd.f32 %v910, %v1553
        %v1555 = vpop.f32.mrf.mxu0
        %v1556 = vadd.f32 %v910, %v1555
        %1557 = vmatmul.bf16.gmra.mxu0 %v833
        %v1558 = vpop.f32.mrf.mxu0
        %v1559 = vadd.f32 %v910, %v1558
        %v1560 = vpop.f32.mrf.mxu0
        %v1561 = vadd.f32 %v910, %v1560
        %1562 = vmatmul.bf16.gmra.mxu0 %v835
        %v1563 = vpop.f32.mrf.mxu0
        %v1564 = vadd.f32 %v910, %v1563
        %v1565 = vpop.f32.mrf.mxu0
        %v1566 = vadd.f32 %v910, %v1565
        %1567 = vmatmul.bf16.gmra.mxu0 %v837
        %v1568 = vpop.f32.mrf.mxu0
        %v1569 = vadd.f32 %v910, %v1568
        %v1570 = vpop.f32.mrf.mxu0
        %v1571 = vadd.f32 %v910, %v1570
        %1572 = vmatmul.bf16.gmra.mxu0 %v839
        %v1573 = vpop.f32.mrf.mxu0
        %v1574 = vadd.f32 %v910, %v1573
        %v1575 = vpop.f32.mrf.mxu0
        %v1576 = vadd.f32 %v910, %v1575
        %1577 = vdwg.mxu0
        %1578 = vmatpush.bf16.msra.mxu0 %v1170
        %1579 = vmatpush.bf16.msra.mxu0 %v1166
        %1580 = vmatpush.bf16.msra.mxu0 %v1162
        %1581 = vmatpush.bf16.msra.mxu0 %v1158
        %1582 = vmatpush.bf16.msra.mxu0 %v1154
        %1583 = vmatpush.bf16.msra.mxu0 %v1150
        %1584 = vmatpush.bf16.msra.mxu0 %v1146
        %1585 = vmatpush.bf16.msra.mxu0 %v1142
        %1586 = vmatmul.bf16.gmra.mxu0 %v826
        %v1587 = vpop.f32.mrf.mxu0
        %v1588 = vadd.f32 %v1539, %v1587
        %v1589 = vpop.f32.mrf.mxu0
        %v1590 = vadd.f32 %v1541, %v1589
        %1591 = vmatmul.bf16.gmra.mxu0 %v828
        %v1592 = vpop.f32.mrf.mxu0
        %v1593 = vadd.f32 %v1544, %v1592
        %v1594 = vpop.f32.mrf.mxu0
        %v1595 = vadd.f32 %v1546, %v1594
        %1596 = vmatmul.bf16.gmra.mxu0 %v830
        %v1597 = vpop.f32.mrf.mxu0
        %v1598 = vadd.f32 %v1549, %v1597
        %v1599 = vpop.f32.mrf.mxu0
        %v1600 = vadd.f32 %v1551, %v1599
        %1601 = vmatmul.bf16.gmra.mxu0 %v832
        %v1602 = vpop.f32.mrf.mxu0
        %v1603 = vadd.f32 %v1554, %v1602
        %v1604 = vpop.f32.mrf.mxu0
        %v1605 = vadd.f32 %v1556, %v1604
        %1606 = vmatmul.bf16.gmra.mxu0 %v834
        %v1607 = vpop.f32.mrf.mxu0
        %v1608 = vadd.f32 %v1559, %v1607
        %v1609 = vpop.f32.mrf.mxu0
        %v1610 = vadd.f32 %v1561, %v1609
        %1611 = vmatmul.bf16.gmra.mxu0 %v836
        %v1612 = vpop.f32.mrf.mxu0
        %v1613 = vadd.f32 %v1564, %v1612
        %v1614 = vpop.f32.mrf.mxu0
        %v1615 = vadd.f32 %v1566, %v1614
        %1616 = vmatmul.bf16.gmra.mxu0 %v838
        %v1617 = vpop.f32.mrf.mxu0
        %v1618 = vadd.f32 %v1569, %v1617
        %v1619 = vpop.f32.mrf.mxu0
        %v1620 = vadd.f32 %v1571, %v1619
        %1621 = vmatmul.bf16.gmra.mxu0 %v840
        %v1622 = vpop.f32.mrf.mxu0
        %v1623 = vadd.f32 %v1574, %v1622
        %v1624 = vpop.f32.mrf.mxu0
        %v1625 = vadd.f32 %v1576, %v1624
        %1626 = vdwg.mxu0
        %v1627 = vmax.f32 %v1294, 0.0
        %v1628 = vmax.f32 %v1392, 0.0
        %v1629 = vmax.f32 %v1490, 0.0
        %v1630 = vmax.f32 %v1588, 0.0
        %v1631 = vmax.f32 %v1296, 0.0
        %v1632 = vmax.f32 %v1394, 0.0
        %v1633 = vmax.f32 %v1492, 0.0
        %v1634 = vmax.f32 %v1590, 0.0
        %v1635 = vmax.f32 %v1299, 0.0
        %v1636 = vmax.f32 %v1397, 0.0
        %v1637 = vmax.f32 %v1495, 0.0
        %v1638 = vmax.f32 %v1593, 0.0
        %v1639 = vmax.f32 %v1301, 0.0
        %v1640 = vmax.f32 %v1399, 0.0
        %v1641 = vmax.f32 %v1497, 0.0
        %v1642 = vmax.f32 %v1595, 0.0
        %v1643 = vmax.f32 %v1304, 0.0
        %v1644 = vmax.f32 %v1402, 0.0
        %v1645 = vmax.f32 %v1500, 0.0
        %v1646 = vmax.f32 %v1598, 0.0
        %v1647 = vmax.f32 %v1306, 0.0
        %v1648 = vmax.f32 %v1404, 0.0
        %v1649 = vmax.f32 %v1502, 0.0
        %v1650 = vmax.f32 %v1600, 0.0
        %v1651 = vmax.f32 %v1309, 0.0
        %v1652 = vmax.f32 %v1407, 0.0
        %v1653 = vmax.f32 %v1505, 0.0
        %v1654 = vmax.f32 %v1603, 0.0
        %v1655 = vmax.f32 %v1311, 0.0
        %v1656 = vmax.f32 %v1409, 0.0
        %v1657 = vmax.f32 %v1507, 0.0
        %v1658 = vmax.f32 %v1605, 0.0
        %v1659 = vmax.f32 %v1314, 0.0
        %v1660 = vmax.f32 %v1412, 0.0
        %v1661 = vmax.f32 %v1510, 0.0
        %v1662 = vmax.f32 %v1608, 0.0
        %v1663 = vmax.f32 %v1316, 0.0
        %v1664 = vmax.f32 %v1414, 0.0
        %v1665 = vmax.f32 %v1512, 0.0
        %v1666 = vmax.f32 %v1610, 0.0
        %v1667 = vmax.f32 %v1319, 0.0
        %v1668 = vmax.f32 %v1417, 0.0
        %v1669 = vmax.f32 %v1515, 0.0
        %v1670 = vmax.f32 %v1613, 0.0
        %v1671 = vmax.f32 %v1321, 0.0
        %v1672 = vmax.f32 %v1419, 0.0
        %v1673 = vmax.f32 %v1517, 0.0
        %v1674 = vmax.f32 %v1615, 0.0
        %v1675 = vmax.f32 %v1324, 0.0
        %v1676 = vmax.f32 %v1422, 0.0
        %v1677 = vmax.f32 %v1520, 0.0
        %v1678 = vmax.f32 %v1618, 0.0
        %v1679 = vmax.f32 %v1326, 0.0
        %v1680 = vmax.f32 %v1424, 0.0
        %v1681 = vmax.f32 %v1522, 0.0
        %v1682 = vmax.f32 %v1620, 0.0
        %v1683 = vmax.f32 %v1329, 0.0
        %v1684 = vmax.f32 %v1427, 0.0
        %v1685 = vmax.f32 %v1525, 0.0
        %v1686 = vmax.f32 %v1623, 0.0
        %v1687 = vmax.f32 %v1331, 0.0
        %v1688 = vmax.f32 %v1429, 0.0
        %v1689 = vmax.f32 %v1527, 0.0
        %v1690 = vmax.f32 %v1625, 0.0
        %v1691 = vpack.c.bf16 %v1631, %v1627
        %v1692 = vpack.c.bf16 %v1632, %v1628
        %v1693 = vpack.c.bf16 %v1633, %v1629
        %v1694 = vpack.c.bf16 %v1634, %v1630
        %v1695 = vpack.c.bf16 %v1639, %v1635
        %v1696 = vpack.c.bf16 %v1640, %v1636
        %v1697 = vpack.c.bf16 %v1641, %v1637
        %v1698 = vpack.c.bf16 %v1642, %v1638
        %v1699 = vpack.c.bf16 %v1647, %v1643
        %v1700 = vpack.c.bf16 %v1648, %v1644
        %v1701 = vpack.c.bf16 %v1649, %v1645
        %v1702 = vpack.c.bf16 %v1650, %v1646
        %v1703 = vpack.c.bf16 %v1655, %v1651
        %v1704 = vpack.c.bf16 %v1656, %v1652
        %v1705 = vpack.c.bf16 %v1657, %v1653
        %v1706 = vpack.c.bf16 %v1658, %v1654
        %v1707 = vpack.c.bf16 %v1663, %v1659
        %v1708 = vpack.c.bf16 %v1664, %v1660
        %v1709 = vpack.c.bf16 %v1665, %v1661
        %v1710 = vpack.c.bf16 %v1666, %v1662
        %v1711 = vpack.c.bf16 %v1671, %v1667
        %v1712 = vpack.c.bf16 %v1672, %v1668
        %v1713 = vpack.c.bf16 %v1673, %v1669
        %v1714 = vpack.c.bf16 %v1674, %v1670
        %v1715 = vpack.c.bf16 %v1679, %v1675
        %v1716 = vpack.c.bf16 %v1680, %v1676
        %v1717 = vpack.c.bf16 %v1681, %v1677
        %v1718 = vpack.c.bf16 %v1682, %v1678
        %v1719 = vpack.c.bf16 %v1687, %v1683
        %v1720 = vpack.c.bf16 %v1688, %v1684
        %v1721 = vpack.c.bf16 %v1689, %v1685
        %v1722 = vpack.c.bf16 %v1690, %v1686
        %v1723 = vld [vmem:[#allocation7] sm:$0xf]
        %v1724 = vld [vmem:[#allocation7 + $0x4] sm:$0xf]
        %v1725 = vld [vmem:[#allocation7 + $0x8] sm:$0xf]
        %v1726 = vld [vmem:[#allocation7 + $0xc] sm:$0xf]
        %v1727 = vld [vmem:[#allocation7 + $0x10] sm:$0xf]
        %v1728 = vld [vmem:[#allocation7 + $0x14] sm:$0xf]
        %v1729 = vld [vmem:[#allocation7 + $0x18] sm:$0xf]
        %v1730 = vld [vmem:[#allocation7 + $0x1c] sm:$0xf]
        %v1731 = vld [vmem:[#allocation7 + $0x20] sm:$0xf]
        %v1732 = vld [vmem:[#allocation7 + $0x24] sm:$0xf]
        %v1733 = vld [vmem:[#allocation7 + $0x28] sm:$0xf]
        %v1734 = vld [vmem:[#allocation7 + $0x2c] sm:$0xf]
        %v1735 = vld [vmem:[#allocation7 + $0x30] sm:$0xf]
        %v1736 = vld [vmem:[#allocation7 + $0x34] sm:$0xf]
        %v1737 = vld [vmem:[#allocation7 + $0x38] sm:$0xf]
        %v1738 = vld [vmem:[#allocation7 + $0x3c] sm:$0xf]
        %v1739 = vld [vmem:[#allocation7 + $0x40] sm:$0xf]
        %v1740 = vld [vmem:[#allocation7 + $0x44] sm:$0xf]
        %v1741 = vld [vmem:[#allocation7 + $0x48] sm:$0xf]
        %v1742 = vld [vmem:[#allocation7 + $0x4c] sm:$0xf]
        %v1743 = vld [vmem:[#allocation7 + $0x50] sm:$0xf]
        %v1744 = vld [vmem:[#allocation7 + $0x54] sm:$0xf]
        %v1745 = vld [vmem:[#allocation7 + $0x58] sm:$0xf]
        %v1746 = vld [vmem:[#allocation7 + $0x5c] sm:$0xf]
        %v1747 = vld [vmem:[#allocation7 + $0x60] sm:$0xf]
        %v1748 = vld [vmem:[#allocation7 + $0x64] sm:$0xf]
        %v1749 = vld [vmem:[#allocation7 + $0x68] sm:$0xf]
        %v1750 = vld [vmem:[#allocation7 + $0x6c] sm:$0xf]
        %v1751 = vld [vmem:[#allocation7 + $0x70] sm:$0xf]
        %v1752 = vld [vmem:[#allocation7 + $0x74] sm:$0xf]
        %v1753 = vld [vmem:[#allocation7 + $0x78] sm:$0xf]
        %v1754 = vld [vmem:[#allocation7 + $0x7c] sm:$0xf]
        %v1755 = vld [vmem:[#allocation7 + $0x80] sm:$0xf]
        %v1756 = vld [vmem:[#allocation7 + $0x84] sm:$0xf]
        %v1757 = vld [vmem:[#allocation7 + $0x88] sm:$0xf]
        %v1758 = vld [vmem:[#allocation7 + $0x8c] sm:$0xf]
        %v1759 = vld [vmem:[#allocation7 + $0x90] sm:$0xf]
        %v1760 = vld [vmem:[#allocation7 + $0x94] sm:$0xf]
        %v1761 = vld [vmem:[#allocation7 + $0x98] sm:$0xf]
        %v1762 = vld [vmem:[#allocation7 + $0x9c] sm:$0xf]
        %v1763 = vld [vmem:[#allocation7 + $0xa0] sm:$0xf]
        %v1764 = vld [vmem:[#allocation7 + $0xa4] sm:$0xf]
        %v1765 = vld [vmem:[#allocation7 + $0xa8] sm:$0xf]
        %v1766 = vld [vmem:[#allocation7 + $0xac] sm:$0xf]
        %v1767 = vld [vmem:[#allocation7 + $0xb0] sm:$0xf]
        %v1768 = vld [vmem:[#allocation7 + $0xb4] sm:$0xf]
        %v1769 = vld [vmem:[#allocation7 + $0xb8] sm:$0xf]
        %v1770 = vld [vmem:[#allocation7 + $0xbc] sm:$0xf]
        %v1771 = vld [vmem:[#allocation7 + $0xc0] sm:$0xf]
        %v1772 = vld [vmem:[#allocation7 + $0xc4] sm:$0xf]
        %v1773 = vld [vmem:[#allocation7 + $0xc8] sm:$0xf]
        %v1774 = vld [vmem:[#allocation7 + $0xcc] sm:$0xf]
        %v1775 = vld [vmem:[#allocation7 + $0xd0] sm:$0xf]
        %v1776 = vld [vmem:[#allocation7 + $0xd4] sm:$0xf]
        %v1777 = vld [vmem:[#allocation7 + $0xd8] sm:$0xf]
        %v1778 = vld [vmem:[#allocation7 + $0xdc] sm:$0xf]
        %v1779 = vld [vmem:[#allocation7 + $0xe0] sm:$0xf]
        %v1780 = vld [vmem:[#allocation7 + $0xe4] sm:$0xf]
        %v1781 = vld [vmem:[#allocation7 + $0xe8] sm:$0xf]
        %v1782 = vld [vmem:[#allocation7 + $0xec] sm:$0xf]
        %v1783 = vld [vmem:[#allocation7 + $0xf0] sm:$0xf]
        %v1784 = vld [vmem:[#allocation7 + $0xf4] sm:$0xf]
        %v1785 = vld [vmem:[#allocation7 + $0xf8] sm:$0xf]
        %v1786 = vld [vmem:[#allocation7 + $0xfc] sm:$0xf]
        %v1787 = vld [vmem:[%s5] sm:$0x1]
        %v1789 = vperm.slane %v1787, 0
        %v1855 = vunpack.c.l.b16 %v1723
        %v1856 = vunpack.c.l.b16 %v1724
        %v1857 = vunpack.c.l.b16 %v1725
        %v1858 = vunpack.c.l.b16 %v1726
        %v1859 = vunpack.c.l.b16 %v1727
        %v1860 = vunpack.c.l.b16 %v1728
        %v1861 = vunpack.c.l.b16 %v1729
        %v1862 = vunpack.c.l.b16 %v1730
        %v1863 = vunpack.c.l.b16 %v1731
        %v1864 = vunpack.c.l.b16 %v1732
        %v1865 = vunpack.c.l.b16 %v1733
        %v1866 = vunpack.c.l.b16 %v1734
        %v1867 = vunpack.c.l.b16 %v1735
        %v1868 = vunpack.c.l.b16 %v1736
        %v1869 = vunpack.c.l.b16 %v1737
        %v1870 = vunpack.c.l.b16 %v1738
        %v1871 = vunpack.c.l.b16 %v1739
        %v1872 = vunpack.c.l.b16 %v1740
        %v1873 = vunpack.c.l.b16 %v1741
        %v1874 = vunpack.c.l.b16 %v1742
        %v1875 = vunpack.c.l.b16 %v1743
        %v1876 = vunpack.c.l.b16 %v1744
        %v1877 = vunpack.c.l.b16 %v1745
        %v1878 = vunpack.c.l.b16 %v1746
        %v1879 = vunpack.c.l.b16 %v1747
        %v1880 = vunpack.c.l.b16 %v1748
        %v1881 = vunpack.c.l.b16 %v1749
        %v1882 = vunpack.c.l.b16 %v1750
        %v1883 = vunpack.c.l.b16 %v1751
        %v1884 = vunpack.c.l.b16 %v1752
        %v1885 = vunpack.c.l.b16 %v1753
        %v1886 = vunpack.c.l.b16 %v1754
        %v1887 = vunpack.c.l.b16 %v1755
        %v1888 = vunpack.c.l.b16 %v1756
        %v1889 = vunpack.c.l.b16 %v1757
        %v1890 = vunpack.c.l.b16 %v1758
        %v1891 = vunpack.c.l.b16 %v1759
        %v1892 = vunpack.c.l.b16 %v1760
        %v1893 = vunpack.c.l.b16 %v1761
        %v1894 = vunpack.c.l.b16 %v1762
        %v1895 = vunpack.c.l.b16 %v1763
        %v1896 = vunpack.c.l.b16 %v1764
        %v1897 = vunpack.c.l.b16 %v1765
        %v1898 = vunpack.c.l.b16 %v1766
        %v1899 = vunpack.c.l.b16 %v1767
        %v1900 = vunpack.c.l.b16 %v1768
        %v1901 = vunpack.c.l.b16 %v1769
        %v1902 = vunpack.c.l.b16 %v1770
        %v1903 = vunpack.c.l.b16 %v1771
        %v1904 = vunpack.c.l.b16 %v1772
        %v1905 = vunpack.c.l.b16 %v1773
        %v1906 = vunpack.c.l.b16 %v1774
        %v1907 = vunpack.c.l.b16 %v1775
        %v1908 = vunpack.c.l.b16 %v1776
        %v1909 = vunpack.c.l.b16 %v1777
        %v1910 = vunpack.c.l.b16 %v1778
        %v1911 = vunpack.c.l.b16 %v1779
        %v1912 = vunpack.c.l.b16 %v1780
        %v1913 = vunpack.c.l.b16 %v1781
        %v1914 = vunpack.c.l.b16 %v1782
        %v1915 = vunpack.c.l.b16 %v1783
        %v1916 = vunpack.c.l.b16 %v1784
        %v1917 = vunpack.c.l.b16 %v1785
        %v1918 = vunpack.c.l.b16 %v1786
        %v1919 = vpack.c.b16 %v1856, %v1855
        %v1920 = vpack.c.b16 %v1858, %v1857
        %v1921 = vpack.c.b16 %v1860, %v1859
        %v1922 = vpack.c.b16 %v1862, %v1861
        %v1923 = vpack.c.b16 %v1864, %v1863
        %v1924 = vpack.c.b16 %v1866, %v1865
        %v1925 = vpack.c.b16 %v1868, %v1867
        %v1926 = vpack.c.b16 %v1870, %v1869
        %v1927 = vpack.c.b16 %v1872, %v1871
        %v1928 = vpack.c.b16 %v1874, %v1873
        %v1929 = vpack.c.b16 %v1876, %v1875
        %v1930 = vpack.c.b16 %v1878, %v1877
        %v1931 = vpack.c.b16 %v1880, %v1879
        %v1932 = vpack.c.b16 %v1882, %v1881
        %v1933 = vpack.c.b16 %v1884, %v1883
        %v1934 = vpack.c.b16 %v1886, %v1885
        %v1935 = vpack.c.b16 %v1888, %v1887
        %v1936 = vpack.c.b16 %v1890, %v1889
        %v1937 = vpack.c.b16 %v1892, %v1891
        %v1938 = vpack.c.b16 %v1894, %v1893
        %v1939 = vpack.c.b16 %v1896, %v1895
        %v1940 = vpack.c.b16 %v1898, %v1897
        %v1941 = vpack.c.b16 %v1900, %v1899
        %v1942 = vpack.c.b16 %v1902, %v1901
        %v1943 = vpack.c.b16 %v1904, %v1903
        %v1944 = vpack.c.b16 %v1906, %v1905
        %v1945 = vpack.c.b16 %v1908, %v1907
        %v1946 = vpack.c.b16 %v1910, %v1909
        %v1947 = vpack.c.b16 %v1912, %v1911
        %v1948 = vpack.c.b16 %v1914, %v1913
        %v1949 = vpack.c.b16 %v1916, %v1915
        %v1950 = vpack.c.b16 %v1918, %v1917
        %1983 = vmatpush.bf16.msra.mxu0 %v1926
        %1984 = vmatpush.bf16.msra.mxu0 %v1925
        %1985 = vmatpush.bf16.msra.mxu0 %v1924
        %1986 = vmatpush.bf16.msra.mxu0 %v1923
        %1987 = vmatpush.bf16.msra.mxu0 %v1922
        %1988 = vmatpush.bf16.msra.mxu0 %v1921
        %1989 = vmatpush.bf16.msra.mxu0 %v1920
        %1990 = vmatpush.bf16.msra.mxu0 %v1919
        %1991 = vmatmul.bf16.gmra.mxu0 %v1691
        %v1992 = vpop.f32.mrf.mxu0
        %v1993 = vadd.f32 %v1789, %v1992
        %v1994 = vpop.f32.mrf.mxu0
        %v1995 = vadd.f32 %v1789, %v1994
        %1996 = vmatmul.bf16.gmra.mxu0 %v1695
        %v1997 = vpop.f32.mrf.mxu0
        %v1998 = vadd.f32 %v1789, %v1997
        %v1999 = vpop.f32.mrf.mxu0
        %v2000 = vadd.f32 %v1789, %v1999
        %2001 = vmatmul.bf16.gmra.mxu0 %v1699
        %v2002 = vpop.f32.mrf.mxu0
        %v2003 = vadd.f32 %v1789, %v2002
        %v2004 = vpop.f32.mrf.mxu0
        %v2005 = vadd.f32 %v1789, %v2004
        %2006 = vmatmul.bf16.gmra.mxu0 %v1703
        %v2007 = vpop.f32.mrf.mxu0
        %v2008 = vadd.f32 %v1789, %v2007
        %v2009 = vpop.f32.mrf.mxu0
        %v2010 = vadd.f32 %v1789, %v2009
        %2011 = vmatmul.bf16.gmra.mxu0 %v1707
        %v2012 = vpop.f32.mrf.mxu0
        %v2013 = vadd.f32 %v1789, %v2012
        %v2014 = vpop.f32.mrf.mxu0
        %v2015 = vadd.f32 %v1789, %v2014
        %2016 = vmatmul.bf16.gmra.mxu0 %v1711
        %v2017 = vpop.f32.mrf.mxu0
        %v2018 = vadd.f32 %v1789, %v2017
        %v2019 = vpop.f32.mrf.mxu0
        %v2020 = vadd.f32 %v1789, %v2019
        %2021 = vmatmul.bf16.gmra.mxu0 %v1715
        %v2022 = vpop.f32.mrf.mxu0
        %v2023 = vadd.f32 %v1789, %v2022
        %v2024 = vpop.f32.mrf.mxu0
        %v2025 = vadd.f32 %v1789, %v2024
        %2026 = vmatmul.bf16.gmra.mxu0 %v1719
        %v2027 = vpop.f32.mrf.mxu0
        %v2028 = vadd.f32 %v1789, %v2027
        %v2029 = vpop.f32.mrf.mxu0
        %v2030 = vadd.f32 %v1789, %v2029
        %2031 = vdwg.mxu0
        %2032 = vmatpush.bf16.msra.mxu0 %v1934
        %2033 = vmatpush.bf16.msra.mxu0 %v1933
        %2034 = vmatpush.bf16.msra.mxu0 %v1932
        %2035 = vmatpush.bf16.msra.mxu0 %v1931
        %2036 = vmatpush.bf16.msra.mxu0 %v1930
        %2037 = vmatpush.bf16.msra.mxu0 %v1929
        %2038 = vmatpush.bf16.msra.mxu0 %v1928
        %2039 = vmatpush.bf16.msra.mxu0 %v1927
        %2040 = vmatmul.bf16.gmra.mxu0 %v1692
        %v2041 = vpop.f32.mrf.mxu0
        %v2042 = vadd.f32 %v1993, %v2041
        %v2043 = vpop.f32.mrf.mxu0
        %v2044 = vadd.f32 %v1995, %v2043
        %2045 = vmatmul.bf16.gmra.mxu0 %v1696
        %v2046 = vpop.f32.mrf.mxu0
        %v2047 = vadd.f32 %v1998, %v2046
        %v2048 = vpop.f32.mrf.mxu0
        %v2049 = vadd.f32 %v2000, %v2048
        %2050 = vmatmul.bf16.gmra.mxu0 %v1700
        %v2051 = vpop.f32.mrf.mxu0
        %v2052 = vadd.f32 %v2003, %v2051
        %v2053 = vpop.f32.mrf.mxu0
        %v2054 = vadd.f32 %v2005, %v2053
        %2055 = vmatmul.bf16.gmra.mxu0 %v1704
        %v2056 = vpop.f32.mrf.mxu0
        %v2057 = vadd.f32 %v2008, %v2056
        %v2058 = vpop.f32.mrf.mxu0
        %v2059 = vadd.f32 %v2010, %v2058
        %2060 = vmatmul.bf16.gmra.mxu0 %v1708
        %v2061 = vpop.f32.mrf.mxu0
        %v2062 = vadd.f32 %v2013, %v2061
        %v2063 = vpop.f32.mrf.mxu0
        %v2064 = vadd.f32 %v2015, %v2063
        %2065 = vmatmul.bf16.gmra.mxu0 %v1712
        %v2066 = vpop.f32.mrf.mxu0
        %v2067 = vadd.f32 %v2018, %v2066
        %v2068 = vpop.f32.mrf.mxu0
        %v2069 = vadd.f32 %v2020, %v2068
        %2070 = vmatmul.bf16.gmra.mxu0 %v1716
        %v2071 = vpop.f32.mrf.mxu0
        %v2072 = vadd.f32 %v2023, %v2071
        %v2073 = vpop.f32.mrf.mxu0
        %v2074 = vadd.f32 %v2025, %v2073
        %2075 = vmatmul.bf16.gmra.mxu0 %v1720
        %v2076 = vpop.f32.mrf.mxu0
        %v2077 = vadd.f32 %v2028, %v2076
        %v2078 = vpop.f32.mrf.mxu0
        %v2079 = vadd.f32 %v2030, %v2078
        %2080 = vdwg.mxu0
        %2081 = vmatpush.bf16.msra.mxu0 %v1942
        %2082 = vmatpush.bf16.msra.mxu0 %v1941
        %2083 = vmatpush.bf16.msra.mxu0 %v1940
        %2084 = vmatpush.bf16.msra.mxu0 %v1939
        %2085 = vmatpush.bf16.msra.mxu0 %v1938
        %2086 = vmatpush.bf16.msra.mxu0 %v1937
        %2087 = vmatpush.bf16.msra.mxu0 %v1936
        %2088 = vmatpush.bf16.msra.mxu0 %v1935
        %2089 = vmatmul.bf16.gmra.mxu0 %v1693
        %v2090 = vpop.f32.mrf.mxu0
        %v2091 = vadd.f32 %v2042, %v2090
        %v2092 = vpop.f32.mrf.mxu0
        %v2093 = vadd.f32 %v2044, %v2092
        %2094 = vmatmul.bf16.gmra.mxu0 %v1697
        %v2095 = vpop.f32.mrf.mxu0
        %v2096 = vadd.f32 %v2047, %v2095
        %v2097 = vpop.f32.mrf.mxu0
        %v2098 = vadd.f32 %v2049, %v2097
        %2099 = vmatmul.bf16.gmra.mxu0 %v1701
        %v2100 = vpop.f32.mrf.mxu0
        %v2101 = vadd.f32 %v2052, %v2100
        %v2102 = vpop.f32.mrf.mxu0
        %v2103 = vadd.f32 %v2054, %v2102
        %2104 = vmatmul.bf16.gmra.mxu0 %v1705
        %v2105 = vpop.f32.mrf.mxu0
        %v2106 = vadd.f32 %v2057, %v2105
        %v2107 = vpop.f32.mrf.mxu0
        %v2108 = vadd.f32 %v2059, %v2107
        %2109 = vmatmul.bf16.gmra.mxu0 %v1709
        %v2110 = vpop.f32.mrf.mxu0
        %v2111 = vadd.f32 %v2062, %v2110
        %v2112 = vpop.f32.mrf.mxu0
        %v2113 = vadd.f32 %v2064, %v2112
        %2114 = vmatmul.bf16.gmra.mxu0 %v1713
        %v2115 = vpop.f32.mrf.mxu0
        %v2116 = vadd.f32 %v2067, %v2115
        %v2117 = vpop.f32.mrf.mxu0
        %v2118 = vadd.f32 %v2069, %v2117
        %2119 = vmatmul.bf16.gmra.mxu0 %v1717
        %v2120 = vpop.f32.mrf.mxu0
        %v2121 = vadd.f32 %v2072, %v2120
        %v2122 = vpop.f32.mrf.mxu0
        %v2123 = vadd.f32 %v2074, %v2122
        %2124 = vmatmul.bf16.gmra.mxu0 %v1721
        %v2125 = vpop.f32.mrf.mxu0
        %v2126 = vadd.f32 %v2077, %v2125
        %v2127 = vpop.f32.mrf.mxu0
        %v2128 = vadd.f32 %v2079, %v2127
        %2129 = vdwg.mxu0
        %2130 = vmatpush.bf16.msra.mxu0 %v1950
        %2131 = vmatpush.bf16.msra.mxu0 %v1949
        %2132 = vmatpush.bf16.msra.mxu0 %v1948
        %2133 = vmatpush.bf16.msra.mxu0 %v1947
        %2134 = vmatpush.bf16.msra.mxu0 %v1946
        %2135 = vmatpush.bf16.msra.mxu0 %v1945
        %2136 = vmatpush.bf16.msra.mxu0 %v1944
        %2137 = vmatpush.bf16.msra.mxu0 %v1943
        %2138 = vmatmul.bf16.gmra.mxu0 %v1694
        %v2139 = vpop.f32.mrf.mxu0
        %v2140 = vadd.f32 %v2091, %v2139
        %v2141 = vpop.f32.mrf.mxu0
        %v2142 = vadd.f32 %v2093, %v2141
        %2143 = vmatmul.bf16.gmra.mxu0 %v1698
        %v2144 = vpop.f32.mrf.mxu0
        %v2145 = vadd.f32 %v2096, %v2144
        %v2146 = vpop.f32.mrf.mxu0
        %v2147 = vadd.f32 %v2098, %v2146
        %2148 = vmatmul.bf16.gmra.mxu0 %v1702
        %v2149 = vpop.f32.mrf.mxu0
        %v2150 = vadd.f32 %v2101, %v2149
        %v2151 = vpop.f32.mrf.mxu0
        %v2152 = vadd.f32 %v2103, %v2151
        %2153 = vmatmul.bf16.gmra.mxu0 %v1706
        %v2154 = vpop.f32.mrf.mxu0
        %v2155 = vadd.f32 %v2106, %v2154
        %v2156 = vpop.f32.mrf.mxu0
        %v2157 = vadd.f32 %v2108, %v2156
        %2158 = vmatmul.bf16.gmra.mxu0 %v1710
        %v2159 = vpop.f32.mrf.mxu0
        %v2160 = vadd.f32 %v2111, %v2159
        %v2161 = vpop.f32.mrf.mxu0
        %v2162 = vadd.f32 %v2113, %v2161
        %2163 = vmatmul.bf16.gmra.mxu0 %v1714
        %v2164 = vpop.f32.mrf.mxu0
        %v2165 = vadd.f32 %v2116, %v2164
        %v2166 = vpop.f32.mrf.mxu0
        %v2167 = vadd.f32 %v2118, %v2166
        %2168 = vmatmul.bf16.gmra.mxu0 %v1718
        %v2169 = vpop.f32.mrf.mxu0
        %v2170 = vadd.f32 %v2121, %v2169
        %v2171 = vpop.f32.mrf.mxu0
        %v2172 = vadd.f32 %v2123, %v2171
        %2173 = vmatmul.bf16.gmra.mxu0 %v1722
        %v2174 = vpop.f32.mrf.mxu0
        %v2175 = vadd.f32 %v2126, %v2174
        %v2176 = vpop.f32.mrf.mxu0
        %v2177 = vadd.f32 %v2128, %v2176
        %2178 = vdwg.mxu0
        %2179 = vadd.xlane.f32.xlu0 %v2140
        %v2180 = vpop.xlane.xlu0 %2179
        %2181 = vadd.xlane.f32.xlu0 %v2142
        %v2182 = vpop.xlane.xlu0 %2181
        %2183 = vadd.xlane.f32.xlu0 %v2145
        %v2184 = vpop.xlane.xlu0 %2183
        %2185 = vadd.xlane.f32.xlu0 %v2147
        %v2186 = vpop.xlane.xlu0 %2185
        %2187 = vadd.xlane.f32.xlu0 %v2150
        %v2188 = vpop.xlane.xlu0 %2187
        %2189 = vadd.xlane.f32.xlu0 %v2152
        %v2190 = vpop.xlane.xlu0 %2189
        %2191 = vadd.xlane.f32.xlu0 %v2155
        %v2192 = vpop.xlane.xlu0 %2191
        %2193 = vadd.xlane.f32.xlu0 %v2157
        %v2194 = vpop.xlane.xlu0 %2193
        %2195 = vadd.xlane.f32.xlu0 %v2160
        %v2196 = vpop.xlane.xlu0 %2195
        %2197 = vadd.xlane.f32.xlu0 %v2162
        %v2198 = vpop.xlane.xlu0 %2197
        %2199 = vadd.xlane.f32.xlu0 %v2165
        %v2200 = vpop.xlane.xlu0 %2199
        %2201 = vadd.xlane.f32.xlu0 %v2167
        %v2202 = vpop.xlane.xlu0 %2201
        %2203 = vadd.xlane.f32.xlu0 %v2170
        %v2204 = vpop.xlane.xlu0 %2203
        %2205 = vadd.xlane.f32.xlu0 %v2172
        %v2206 = vpop.xlane.xlu0 %2205
        %2207 = vadd.xlane.f32.xlu0 %v2175
        %v2208 = vpop.xlane.xlu0 %2207
        %2209 = vadd.xlane.f32.xlu0 %v2177
        %v2210 = vpop.xlane.xlu0 %2209
        %v2211 = vrcp.pop 128.0
        %v2212 = vmul.f32 128.0, %v2211
        %v2213 = vsub.f32 1.0, %v2212
        %v2214 = vmul.f32 %v2211, %v2213
        %v2215 = vadd.f32 %v2211, %v2214
        %vm2216 = vweird.f32 %v2211
        %v2217 = vsel %vm2216, %v2211, %v2215
        %v2218 = vmul.f32 %v2180, %v2217
        %v2219 = vmul.f32 %v2182, %v2217
        %v2220 = vmul.f32 %v2184, %v2217
        %v2221 = vmul.f32 %v2186, %v2217
        %v2222 = vmul.f32 %v2188, %v2217
        %v2223 = vmul.f32 %v2190, %v2217
        %v2224 = vmul.f32 %v2192, %v2217
        %v2225 = vmul.f32 %v2194, %v2217
        %v2226 = vmul.f32 %v2196, %v2217
        %v2227 = vmul.f32 %v2198, %v2217
        %v2228 = vmul.f32 %v2200, %v2217
        %v2229 = vmul.f32 %v2202, %v2217
        %v2230 = vmul.f32 %v2204, %v2217
        %v2231 = vmul.f32 %v2206, %v2217
        %v2232 = vmul.f32 %v2208, %v2217
        %v2233 = vmul.f32 %v2210, %v2217
        %v2234 = vsub.f32 %v2140, %v2218
        %v2235 = vsub.f32 %v2142, %v2219
        %v2236 = vsub.f32 %v2145, %v2220
        %v2237 = vsub.f32 %v2147, %v2221
        %v2238 = vsub.f32 %v2150, %v2222
        %v2239 = vsub.f32 %v2152, %v2223
        %v2240 = vsub.f32 %v2155, %v2224
        %v2241 = vsub.f32 %v2157, %v2225
        %v2242 = vsub.f32 %v2160, %v2226
        %v2243 = vsub.f32 %v2162, %v2227
        %v2244 = vsub.f32 %v2165, %v2228
        %v2245 = vsub.f32 %v2167, %v2229
        %v2246 = vsub.f32 %v2170, %v2230
        %v2247 = vsub.f32 %v2172, %v2231
        %v2248 = vsub.f32 %v2175, %v2232
        %v2249 = vsub.f32 %v2177, %v2233
        %v2250 = vmul.f32 %v2234, %v2234
        %v2251 = vmul.f32 %v2235, %v2235
        %v2252 = vmul.f32 %v2236, %v2236
        %v2253 = vmul.f32 %v2237, %v2237
        %v2254 = vmul.f32 %v2238, %v2238
        %v2255 = vmul.f32 %v2239, %v2239
        %v2256 = vmul.f32 %v2240, %v2240
        %v2257 = vmul.f32 %v2241, %v2241
        %v2258 = vmul.f32 %v2242, %v2242
        %v2259 = vmul.f32 %v2243, %v2243
        %v2260 = vmul.f32 %v2244, %v2244
        %v2261 = vmul.f32 %v2245, %v2245
        %v2262 = vmul.f32 %v2246, %v2246
        %v2263 = vmul.f32 %v2247, %v2247
        %v2264 = vmul.f32 %v2248, %v2248
        %v2265 = vmul.f32 %v2249, %v2249
        %2266 = vadd.xlane.f32.xlu0 %v2250
        %v2267 = vpop.xlane.xlu0 %2266
        %2268 = vadd.xlane.f32.xlu0 %v2251
        %v2269 = vpop.xlane.xlu0 %2268
        %2270 = vadd.xlane.f32.xlu0 %v2252
        %v2271 = vpop.xlane.xlu0 %2270
        %2272 = vadd.xlane.f32.xlu0 %v2253
        %v2273 = vpop.xlane.xlu0 %2272
        %2274 = vadd.xlane.f32.xlu0 %v2254
        %v2275 = vpop.xlane.xlu0 %2274
        %2276 = vadd.xlane.f32.xlu0 %v2255
        %v2277 = vpop.xlane.xlu0 %2276
        %2278 = vadd.xlane.f32.xlu0 %v2256
        %v2279 = vpop.xlane.xlu0 %2278
        %2280 = vadd.xlane.f32.xlu0 %v2257
        %v2281 = vpop.xlane.xlu0 %2280
        %2282 = vadd.xlane.f32.xlu0 %v2258
        %v2283 = vpop.xlane.xlu0 %2282
        %2284 = vadd.xlane.f32.xlu0 %v2259
        %v2285 = vpop.xlane.xlu0 %2284
        %2286 = vadd.xlane.f32.xlu0 %v2260
        %v2287 = vpop.xlane.xlu0 %2286
        %2288 = vadd.xlane.f32.xlu0 %v2261
        %v2289 = vpop.xlane.xlu0 %2288
        %2290 = vadd.xlane.f32.xlu0 %v2262
        %v2291 = vpop.xlane.xlu0 %2290
        %2292 = vadd.xlane.f32.xlu0 %v2263
        %v2293 = vpop.xlane.xlu0 %2292
        %2294 = vadd.xlane.f32.xlu0 %v2264
        %v2295 = vpop.xlane.xlu0 %2294
        %2296 = vadd.xlane.f32.xlu0 %v2265
        %v2297 = vpop.xlane.xlu0 %2296
        %v2298 = vmul.f32 %v2267, %v2217
        %v2299 = vmul.f32 %v2269, %v2217
        %v2300 = vmul.f32 %v2271, %v2217
        %v2301 = vmul.f32 %v2273, %v2217
        %v2302 = vmul.f32 %v2275, %v2217
        %v2303 = vmul.f32 %v2277, %v2217
        %v2304 = vmul.f32 %v2279, %v2217
        %v2305 = vmul.f32 %v2281, %v2217
        %v2306 = vmul.f32 %v2283, %v2217
        %v2307 = vmul.f32 %v2285, %v2217
        %v2308 = vmul.f32 %v2287, %v2217
        %v2309 = vmul.f32 %v2289, %v2217
        %v2310 = vmul.f32 %v2291, %v2217
        %v2311 = vmul.f32 %v2293, %v2217
        %v2312 = vmul.f32 %v2295, %v2217
        %v2313 = vmul.f32 %v2297, %v2217
        %v2314 = vadd.f32 %v2298, 1e-05
        %v2315 = vadd.f32 %v2299, 1e-05
        %v2316 = vadd.f32 %v2300, 1e-05
        %v2317 = vadd.f32 %v2301, 1e-05
        %v2318 = vadd.f32 %v2302, 1e-05
        %v2319 = vadd.f32 %v2303, 1e-05
        %v2320 = vadd.f32 %v2304, 1e-05
        %v2321 = vadd.f32 %v2305, 1e-05
        %v2322 = vadd.f32 %v2306, 1e-05
        %v2323 = vadd.f32 %v2307, 1e-05
        %v2324 = vadd.f32 %v2308, 1e-05
        %v2325 = vadd.f32 %v2309, 1e-05
        %v2326 = vadd.f32 %v2310, 1e-05
        %v2327 = vadd.f32 %v2311, 1e-05
        %v2328 = vadd.f32 %v2312, 1e-05
        %v2329 = vadd.f32 %v2313, 1e-05
        %v2330 = vrsqrt.pop %v2314
        %v2331 = vmul.f32 %v2330, %v2314
        %v2332 = vmul.f32 %v2331, %v2330
        %v2333 = vmul.f32 0.5, %v2332
        %v2334 = vsub.f32 1.5, %v2333
        %v2335 = vmul.f32 %v2330, %v2334
        %vm2336 = vweird.f32 %v2314
        %vm2337 = vweird.f32 %v2330
        %vm2338 = vmor %vm2336, %vm2337
        %v2339 = vsel %vm2338, %v2330, %v2335
        %v2340 = vrsqrt.pop %v2315
        %v2341 = vmul.f32 %v2340, %v2315
        %v2342 = vmul.f32 %v2341, %v2340
        %v2343 = vmul.f32 0.5, %v2342
        %v2344 = vsub.f32 1.5, %v2343
        %v2345 = vmul.f32 %v2340, %v2344
        %vm2346 = vweird.f32 %v2315
        %vm2347 = vweird.f32 %v2340
        %vm2348 = vmor %vm2346, %vm2347
        %v2349 = vsel %vm2348, %v2340, %v2345
        %v2350 = vrsqrt.pop %v2316
        %v2351 = vmul.f32 %v2350, %v2316
        %v2352 = vmul.f32 %v2351, %v2350
        %v2353 = vmul.f32 0.5, %v2352
        %v2354 = vsub.f32 1.5, %v2353
        %v2355 = vmul.f32 %v2350, %v2354
        %vm2356 = vweird.f32 %v2316
        %vm2357 = vweird.f32 %v2350
        %vm2358 = vmor %vm2356, %vm2357
        %v2359 = vsel %vm2358, %v2350, %v2355
        %v2360 = vrsqrt.pop %v2317
        %v2361 = vmul.f32 %v2360, %v2317
        %v2362 = vmul.f32 %v2361, %v2360
        %v2363 = vmul.f32 0.5, %v2362
        %v2364 = vsub.f32 1.5, %v2363
        %v2365 = vmul.f32 %v2360, %v2364
        %vm2366 = vweird.f32 %v2317
        %vm2367 = vweird.f32 %v2360
        %vm2368 = vmor %vm2366, %vm2367
        %v2369 = vsel %vm2368, %v2360, %v2365
        %v2370 = vrsqrt.pop %v2318
        %v2371 = vmul.f32 %v2370, %v2318
        %v2372 = vmul.f32 %v2371, %v2370
        %v2373 = vmul.f32 0.5, %v2372
        %v2374 = vsub.f32 1.5, %v2373
        %v2375 = vmul.f32 %v2370, %v2374
        %vm2376 = vweird.f32 %v2318
        %vm2377 = vweird.f32 %v2370
        %vm2378 = vmor %vm2376, %vm2377
        %v2379 = vsel %vm2378, %v2370, %v2375
        %v2380 = vrsqrt.pop %v2319
        %v2381 = vmul.f32 %v2380, %v2319
        %v2382 = vmul.f32 %v2381, %v2380
        %v2383 = vmul.f32 0.5, %v2382
        %v2384 = vsub.f32 1.5, %v2383
        %v2385 = vmul.f32 %v2380, %v2384
        %vm2386 = vweird.f32 %v2319
        %vm2387 = vweird.f32 %v2380
        %vm2388 = vmor %vm2386, %vm2387
        %v2389 = vsel %vm2388, %v2380, %v2385
        %v2390 = vrsqrt.pop %v2320
        %v2391 = vmul.f32 %v2390, %v2320
        %v2392 = vmul.f32 %v2391, %v2390
        %v2393 = vmul.f32 0.5, %v2392
        %v2394 = vsub.f32 1.5, %v2393
        %v2395 = vmul.f32 %v2390, %v2394
        %vm2396 = vweird.f32 %v2320
        %vm2397 = vweird.f32 %v2390
        %vm2398 = vmor %vm2396, %vm2397
        %v2399 = vsel %vm2398, %v2390, %v2395
        %v2400 = vrsqrt.pop %v2321
        %v2401 = vmul.f32 %v2400, %v2321
        %v2402 = vmul.f32 %v2401, %v2400
        %v2403 = vmul.f32 0.5, %v2402
        %v2404 = vsub.f32 1.5, %v2403
        %v2405 = vmul.f32 %v2400, %v2404
        %vm2406 = vweird.f32 %v2321
        %vm2407 = vweird.f32 %v2400
        %vm2408 = vmor %vm2406, %vm2407
        %v2409 = vsel %vm2408, %v2400, %v2405
        %v2410 = vrsqrt.pop %v2322
        %v2411 = vmul.f32 %v2410, %v2322
        %v2412 = vmul.f32 %v2411, %v2410
        %v2413 = vmul.f32 0.5, %v2412
        %v2414 = vsub.f32 1.5, %v2413
        %v2415 = vmul.f32 %v2410, %v2414
        %vm2416 = vweird.f32 %v2322
        %vm2417 = vweird.f32 %v2410
        %vm2418 = vmor %vm2416, %vm2417
        %v2419 = vsel %vm2418, %v2410, %v2415
        %v2420 = vrsqrt.pop %v2323
        %v2421 = vmul.f32 %v2420, %v2323
        %v2422 = vmul.f32 %v2421, %v2420
        %v2423 = vmul.f32 0.5, %v2422
        %v2424 = vsub.f32 1.5, %v2423
        %v2425 = vmul.f32 %v2420, %v2424
        %vm2426 = vweird.f32 %v2323
        %vm2427 = vweird.f32 %v2420
        %vm2428 = vmor %vm2426, %vm2427
        %v2429 = vsel %vm2428, %v2420, %v2425
        %v2430 = vrsqrt.pop %v2324
        %v2431 = vmul.f32 %v2430, %v2324
        %v2432 = vmul.f32 %v2431, %v2430
        %v2433 = vmul.f32 0.5, %v2432
        %v2434 = vsub.f32 1.5, %v2433
        %v2435 = vmul.f32 %v2430, %v2434
        %vm2436 = vweird.f32 %v2324
        %vm2437 = vweird.f32 %v2430
        %vm2438 = vmor %vm2436, %vm2437
        %v2439 = vsel %vm2438, %v2430, %v2435
        %v2440 = vrsqrt.pop %v2325
        %v2441 = vmul.f32 %v2440, %v2325
        %v2442 = vmul.f32 %v2441, %v2440
        %v2443 = vmul.f32 0.5, %v2442
        %v2444 = vsub.f32 1.5, %v2443
        %v2445 = vmul.f32 %v2440, %v2444
        %vm2446 = vweird.f32 %v2325
        %vm2447 = vweird.f32 %v2440
        %vm2448 = vmor %vm2446, %vm2447
        %v2449 = vsel %vm2448, %v2440, %v2445
        %v2450 = vrsqrt.pop %v2326
        %v2451 = vmul.f32 %v2450, %v2326
        %v2452 = vmul.f32 %v2451, %v2450
        %v2453 = vmul.f32 0.5, %v2452
        %v2454 = vsub.f32 1.5, %v2453
        %v2455 = vmul.f32 %v2450, %v2454
        %vm2456 = vweird.f32 %v2326
        %vm2457 = vweird.f32 %v2450
        %vm2458 = vmor %vm2456, %vm2457
        %v2459 = vsel %vm2458, %v2450, %v2455
        %v2460 = vrsqrt.pop %v2327
        %v2461 = vmul.f32 %v2460, %v2327
        %v2462 = vmul.f32 %v2461, %v2460
        %v2463 = vmul.f32 0.5, %v2462
        %v2464 = vsub.f32 1.5, %v2463
        %v2465 = vmul.f32 %v2460, %v2464
        %vm2466 = vweird.f32 %v2327
        %vm2467 = vweird.f32 %v2460
        %vm2468 = vmor %vm2466, %vm2467
        %v2469 = vsel %vm2468, %v2460, %v2465
        %v2470 = vrsqrt.pop %v2328
        %v2471 = vmul.f32 %v2470, %v2328
        %v2472 = vmul.f32 %v2471, %v2470
        %v2473 = vmul.f32 0.5, %v2472
        %v2474 = vsub.f32 1.5, %v2473
        %v2475 = vmul.f32 %v2470, %v2474
        %vm2476 = vweird.f32 %v2328
        %vm2477 = vweird.f32 %v2470
        %vm2478 = vmor %vm2476, %vm2477
        %v2479 = vsel %vm2478, %v2470, %v2475
        %v2480 = vrsqrt.pop %v2329
        %v2481 = vmul.f32 %v2480, %v2329
        %v2482 = vmul.f32 %v2481, %v2480
        %v2483 = vmul.f32 0.5, %v2482
        %v2484 = vsub.f32 1.5, %v2483
        %v2485 = vmul.f32 %v2480, %v2484
        %vm2486 = vweird.f32 %v2329
        %vm2487 = vweird.f32 %v2480
        %vm2488 = vmor %vm2486, %vm2487
        %v2489 = vsel %vm2488, %v2480, %v2485
        %v2490 = vmul.f32 %v2234, %v2339
        %v2491 = vmul.f32 %v2235, %v2349
        %v2492 = vmul.f32 %v2236, %v2359
        %v2493 = vmul.f32 %v2237, %v2369
        %v2494 = vmul.f32 %v2238, %v2379
        %v2495 = vmul.f32 %v2239, %v2389
        %v2496 = vmul.f32 %v2240, %v2399
        %v2497 = vmul.f32 %v2241, %v2409
        %v2498 = vmul.f32 %v2242, %v2419
        %v2499 = vmul.f32 %v2243, %v2429
        %v2500 = vmul.f32 %v2244, %v2439
        %v2501 = vmul.f32 %v2245, %v2449
        %v2502 = vmul.f32 %v2246, %v2459
        %v2503 = vmul.f32 %v2247, %v2469
        %v2504 = vmul.f32 %v2248, %v2479
        %v2505 = vmul.f32 %v2249, %v2489
        %v2507 = vperm.slane %v342, 0
        %v2509 = vmul.f32 %v2507, %v2490
        %v2510 = vmul.f32 %v2507, %v2491
        %v2511 = vmul.f32 %v2507, %v2492
        %v2512 = vmul.f32 %v2507, %v2493
        %v2513 = vmul.f32 %v2507, %v2494
        %v2514 = vmul.f32 %v2507, %v2495
        %v2515 = vmul.f32 %v2507, %v2496
        %v2516 = vmul.f32 %v2507, %v2497
        %v2517 = vmul.f32 %v2507, %v2498
        %v2518 = vmul.f32 %v2507, %v2499
        %v2519 = vmul.f32 %v2507, %v2500
        %v2520 = vmul.f32 %v2507, %v2501
        %v2521 = vmul.f32 %v2507, %v2502
        %v2522 = vmul.f32 %v2507, %v2503
        %v2523 = vmul.f32 %v2507, %v2504
        %v2524 = vmul.f32 %v2507, %v2505
        %v2526 = vperm.slane %v343, 0
        %v2528 = vadd.f32 %v2509, %v2526
        %v2529 = vadd.f32 %v2510, %v2526
        %v2530 = vadd.f32 %v2511, %v2526
        %v2531 = vadd.f32 %v2512, %v2526
        %v2532 = vadd.f32 %v2513, %v2526
        %v2533 = vadd.f32 %v2514, %v2526
        %v2534 = vadd.f32 %v2515, %v2526
        %v2535 = vadd.f32 %v2516, %v2526
        %v2536 = vadd.f32 %v2517, %v2526
        %v2537 = vadd.f32 %v2518, %v2526
        %v2538 = vadd.f32 %v2519, %v2526
        %v2539 = vadd.f32 %v2520, %v2526
        %v2540 = vadd.f32 %v2521, %v2526
        %v2541 = vadd.f32 %v2522, %v2526
        %v2542 = vadd.f32 %v2523, %v2526
        %v2543 = vadd.f32 %v2524, %v2526
        %2544 = vst [vmem:[%s305] sm:$0xff] %v2528
        %2545 = vst [vmem:[%s305 + $0x8] sm:$0xff] %v2529
        %2546 = vst [vmem:[%s305 + $0x10] sm:$0xff] %v2530
        %2547 = vst [vmem:[%s305 + $0x18] sm:$0xff] %v2531
        %2548 = vst [vmem:[%s305 + $0x20] sm:$0xff] %v2532
        %2549 = vst [vmem:[%s305 + $0x28] sm:$0xff] %v2533
        %2550 = vst [vmem:[%s305 + $0x30] sm:$0xff] %v2534
        %2551 = vst [vmem:[%s305 + $0x38] sm:$0xff] %v2535
        %2552 = vst [vmem:[%s305 + $0x40] sm:$0xff] %v2536
        %2553 = vst [vmem:[%s305 + $0x48] sm:$0xff] %v2537
        %2554 = vst [vmem:[%s305 + $0x50] sm:$0xff] %v2538
        %2555 = vst [vmem:[%s305 + $0x58] sm:$0xff] %v2539
        %2556 = vst [vmem:[%s305 + $0x60] sm:$0xff] %v2540
        %2557 = vst [vmem:[%s305 + $0x68] sm:$0xff] %v2541
        %2558 = vst [vmem:[%s305 + $0x70] sm:$0xff] %v2542
        %2559 = vst [vmem:[%s305 + $0x78] sm:$0xff] %v2543
        %s2560 = sand.u32 %s163, 1
        %s2561 = scalar_lea.sflag [#allocation4], %s2560
        %s2562 = sand.u32 %s163, 1
        %s2563 = smul.addr %s2562, 128
        %s2564 = scalar_lea.vmem [#allocation8], %s2563
        // Predicated region
        $region57: #{cnnenc_forward.1} parent=43 // pred_check
          %p2565 = pneg %p173
        $region58: #{cnnenc_forward.1} parent=43 // pred_check_branch
          %2567 = sbr.rel (%p2565) target = $region60
        $region59: #{cnnenc_forward.1} parent=43 // pred_region
          %s2568 = smul.u32 16, %s24
          %2570 = vsyncadd %s2561, 0
          %s2571 = smul.addr %s2568, 8
          %s2572 = scalar_lea.hbm %s6, %s2571
          %s2573 = sshll.u32 %s2564, 4
          %s2574 = int_to_ptr.vmem [resolvable:$true] %s2573
          %s2575 = sshll.u32 %s2572, 4
          %s2576 = int_to_ptr.hbm [resolvable:$true] %s2575
          %2581 = dma.vmem_to_hbm [thread:$0]  %s2574, 2048, %s2576, %s2561, 128, 128, 8
        $region60: #{cnnenc_forward.1} parent=43 // pred_fallthru
          _
      $region44: #{cnnenc_forward.1} parent=5 // pred_fallthru
        _
      %p2582 = scmp.le.s32.totalorder 2, %s19
      // Predicated region
      $region61: #{cnnenc_forward.1} parent=5 // pred_check
        %p2583 = pneg %p2582
      $region62: #{cnnenc_forward.1} parent=5 // pred_check_branch
        %2585 = sbr.rel (%p2583) target = $region64
      $region63: #{cnnenc_forward.1} parent=5 // pred_region
        %s2586 = ssub.s32 %s19, 2
        // Predicated region
        $region65: #{cnnenc_forward.1} parent=63 // pred_check
          %p2587 = pneg %p179
        $region66: #{cnnenc_forward.1} parent=63 // pred_check_branch
          %2589 = sbr.rel (%p2587) target = $region68
        $region67: #{cnnenc_forward.1} parent=63 // pred_region
          %s2590 = sand.u32 %s164, 1
          %s2591 = scalar_lea.sflag [#allocation4], %s2590
          %s2592 = sand.u32 %s164, 1
          %s2593 = smul.addr %s2592, 128
          %s2594 = scalar_lea.vmem [#allocation8], %s2593
          %2596 = dma.done %s2591, 2048
        $region68: #{cnnenc_forward.1} parent=63 // pred_fallthru
          _
      $region64: #{cnnenc_forward.1} parent=5 // pred_fallthru
        _
    $region6: #{cnnenc_forward.1} parent=1 // loop_footer
      %s23 = sadd.s32 1, %s19
    $region7: #{cnnenc_forward.1} parent=1 // loop_footer_branch
      %18 = sbr.rel target = $region3
    $region8: #{cnnenc_forward.1} parent=1 // loop_exit
      _
    %2597 = vsyncpa [#allocation3], 1
    %s2598 = scalar_lea.sflag [#allocation3], 1
    %2599 = vsyncpa %s2598, 1
    %2600 = vsyncpa [#allocation6], 1
    %2601 = vsyncpa [#allocation4], 1
    %s2602 = scalar_lea.sflag [#allocation4], 1
    %2603 = vsyncpa %s2602, 1

</llo_original>
